<compile_context>
chip_gen: v7x
topology: tpu7x:2x2x1
jax: 0.10.0
libtpu: 0.0.40
codegen_flags: <defaults>
</compile_context>

<pallas_src>
import math

import jax
import jax.numpy as jnp
from jax.experimental import pallas as pl
from jax.experimental.pallas import tpu as pltpu

# ----- model hyper-parameters (small, consistent with the module) -----
B = 2          # batch
S = 8          # sequence length
D_MODEL = 32   # d_model
NHEAD = 4
HEAD_DIM = D_MODEL // NHEAD
D_FF = 64      # dim_feedforward
LN_EPS = 1e-5


def encoder_layer_kernel(x_ref, wqkv_ref, wmisc_ref, vec_ref, o_ref):
    """Single invocation over the whole (B*S, ...) problem.

    x_ref    : (B*S, 3*D)  = [q | k | v] concatenated on lanes
    wqkv_ref : (3*D, 3*D)  block-diagonal [Wq*scale, Wk, Wv]
    wmisc_ref: (2*D + F, F) packed slab: rows 0:D   -> Wo (D, D)
                                          rows D:2D  -> W1 (D, F)
                                          rows 2D:   -> W2 (F, D)
    vec_ref  : (8, 3*D)    packed biases / LN params (one per row)
    o_ref    : (B*S, D)
    """
    D, F, HD = D_MODEL, D_FF, HEAD_DIM
    x_cat = x_ref[...].astype(jnp.float32)                       # (B*S, 3D)

    # --- load the small-vector slab once ---
    vecs = vec_ref[...]
    b_qkv = vecs[0:1, :]                                         # (1, 3D) [bq*scale|bk|bv]
    b_o = vecs[1:2, 0:D]
    b_1 = vecs[2:3, 0:F]
    b_2 = vecs[3:4, 0:D]
    g_1 = vecs[4:5, 0:D]
    be_1 = vecs[5:6, 0:D]
    g_2 = vecs[6:7, 0:D]
    be_2 = vecs[7:8, 0:D]

    # --- fused Q/K/V projection: one MXU push against the block-diagonal weight ---
    qkv = jnp.dot(x_cat, wqkv_ref[...],
                  preferred_element_type=jnp.float32) + b_qkv    # (B*S, 3D)

    qp = qkv[:, 0:D].reshape(B, S, D)      # already scaled by 1/sqrt(HD) via packed Wq/bq
    kp = qkv[:, D:2 * D].reshape(B, S, D)
    vp = qkv[:, 2 * D:3 * D].reshape(B, S, D)

    # --- scaled dot-product attention: batched over B per head, no transposes ---
    head_outs = []
    for h in range(NHEAD):                                       # static unroll (4 heads)
        lo = h * HD
        qh = qp[:, :, lo:lo + HD]                                # (B, S, hd)
        kh = kp[:, :, lo:lo + HD]
        vh = vp[:, :, lo:lo + HD]
        s = jnp.einsum('bqd,bkd->bqk', qh, kh,
                       preferred_element_type=jnp.float32)       # (B, S, S)
        s = s - jnp.max(s, axis=-1, keepdims=True)
        p = jnp.exp(s)
        p = p * pl.reciprocal(jnp.sum(p, axis=-1, keepdims=True), approx=True)
        head_outs.append(jnp.einsum('bqk,bkd->bqd', p, vh,
                                    preferred_element_type=jnp.float32))
    ctx = jnp.concatenate(head_outs, axis=-1).reshape(B * S, D)  # (B*S, D)

    # --- output projection ---
    w_o = wmisc_ref[0:D, 0:D]
    attn = jnp.dot(ctx, w_o, preferred_element_type=jnp.float32) + b_o

    # --- residual (with q, exactly as the module does) + LayerNorm 1 ---
    q_in = x_cat[:, 0:D]
    x1 = q_in + attn
    mu = jnp.mean(x1, axis=-1, keepdims=True)
    var = jnp.mean((x1 - mu) ** 2, axis=-1, keepdims=True)
    x1 = (x1 - mu) * jax.lax.rsqrt(var + LN_EPS) * g_1 + be_1

    # --- feed-forward: linear1 -> relu -> linear2 ---
    w_1 = wmisc_ref[D:2 * D, 0:F]
    h1 = jnp.maximum(jnp.dot(x1, w_1, preferred_element_type=jnp.float32) + b_1, 0.0)
    w_2 = wmisc_ref[2 * D:2 * D + F, 0:D]
    h2 = jnp.dot(h1, w_2, preferred_element_type=jnp.float32) + b_2

    # --- residual + LayerNorm 2 ---
    y = x1 + h2
    mu2 = jnp.mean(y, axis=-1, keepdims=True)
    var2 = jnp.mean((y - mu2) ** 2, axis=-1, keepdims=True)
    y = (y - mu2) * jax.lax.rsqrt(var2 + LN_EPS) * g_2 + be_2

    o_ref[...] = y.astype(o_ref.dtype)                           # one lane-contiguous slab


def pack_params(params):
    """One-time packing of the 16 PyTorch-style parameters into 3 arrays.

    The attention scale 1/sqrt(head_dim) is folded into the Wq block and bq row here,
    so the kernel never multiplies scores by the scale.
    """
    (wq, bq, wk, bk, wv, bv, wo, bo, w1, b1, w2, b2, g1, be1, g2, be2) = params
    D, F = D_MODEL, D_FF
    scale = 1.0 / math.sqrt(HEAD_DIM)

    w_qkv = jnp.zeros((3 * D, 3 * D), jnp.float32)
    w_qkv = w_qkv.at[0:D, 0:D].set(wq * scale)
    w_qkv = w_qkv.at[D:2 * D, D:2 * D].set(wk)
    w_qkv = w_qkv.at[2 * D:3 * D, 2 * D:3 * D].set(wv)

    w_misc = jnp.zeros((2 * D + F, F), jnp.float32)              # (128, 64)
    w_misc = w_misc.at[0:D, 0:D].set(wo)
    w_misc = w_misc.at[D:2 * D, 0:F].set(w1)
    w_misc = w_misc.at[2 * D:2 * D + F, 0:D].set(w2)

    vecs = jnp.zeros((8, 3 * D), jnp.float32)                    # (8, 96)
    vecs = vecs.at[0, 0:D].set(bq * scale)
    vecs = vecs.at[0, D:2 * D].set(bk)
    vecs = vecs.at[0, 2 * D:3 * D].set(bv)
    vecs = vecs.at[1, 0:D].set(bo)
    vecs = vecs.at[2, 0:F].set(b1)
    vecs = vecs.at[3, 0:D].set(b2)
    vecs = vecs.at[4, 0:D].set(g1)
    vecs = vecs.at[5, 0:D].set(be1)
    vecs = vecs.at[6, 0:D].set(g2)
    vecs = vecs.at[7, 0:D].set(be2)
    return w_qkv, w_misc, vecs


def transformer_encoder_layer(q, k, v, packed):
    w_qkv, w_misc, vecs = packed
    q2 = q.reshape(B * S, D_MODEL)
    k2 = k.reshape(B * S, D_MODEL)
    v2 = v.reshape(B * S, D_MODEL)
    x_cat = jnp.concatenate([q2, k2, v2], axis=-1)               # (B*S, 3D)

    out2d = pl.pallas_call(
        encoder_layer_kernel,
        out_shape=jax.ShapeDtypeStruct((B * S, D_MODEL), q.dtype),
        grid_spec=pltpu.PrefetchScalarGridSpec(
            num_scalar_prefetch=0,
            grid=(1,),                                           # single invocation
            in_specs=[
                pl.BlockSpec(x_cat.shape, lambda i: (0, 0)),
                pl.BlockSpec(w_qkv.shape, lambda i: (0, 0)),
                pl.BlockSpec(w_misc.shape, lambda i: (0, 0)),
                pl.BlockSpec(vecs.shape, lambda i: (0, 0)),
            ],
            out_specs=pl.BlockSpec((B * S, D_MODEL), lambda i: (0, 0)),
        ),
        compiler_params=pltpu.CompilerParams(
            dimension_semantics=("arbitrary",)),
    )(x_cat, w_qkv, w_misc, vecs)
    return out2d.reshape(B, S, D_MODEL)


# ----- pure-JAX reference for validation (uses the raw, unpacked parameters) -----
def reference(q, k, v, params):
    (wq, bq, wk, bk, wv, bv, wo, bo, w1, b1, w2, b2, g1, be1, g2, be2) = params

    def ln(x, g, b):
        mu = jnp.mean(x, axis=-1, keepdims=True)
        var = jnp.mean((x - mu) ** 2, axis=-1, keepdims=True)
        return (x - mu) * jax.lax.rsqrt(var + LN_EPS) * g + b

    qp = q @ wq + bq
    kp = k @ wk + bk
    vp = v @ wv + bv
    qh = qp.reshape(B, S, NHEAD, HEAD_DIM).transpose(0, 2, 1, 3)
    kh = kp.reshape(B, S, NHEAD, HEAD_DIM).transpose(0, 2, 1, 3)
    vh = vp.reshape(B, S, NHEAD, HEAD_DIM).transpose(0, 2, 1, 3)
    scores = jnp.einsum('bhqd,bhkd->bhqk', qh, kh) / math.sqrt(HEAD_DIM)
    attn = jax.nn.softmax(scores, axis=-1)
    out = jnp.einsum('bhqk,bhkd->bhqd', attn, vh).transpose(0, 2, 1, 3)
    out = out.reshape(B, S, D_MODEL) @ wo + bo
    x = ln(q + out, g1, be1)
    h = jnp.maximum(x @ w1 + b1, 0.0)
    y = ln(x + (h @ w2 + b2), g2, be2)
    return y


def init_params(key):
    ks = jax.random.split(key, 12)

    def lin(kw, kb, fan_in, fan_out):
        bound = 1.0 / math.sqrt(fan_in)
        w = jax.random.uniform(kw, (fan_in, fan_out), jnp.float32, -bound, bound)
        b = jax.random.uniform(kb, (fan_out,), jnp.float32, -bound, bound)
        return w, b

    wq, bq = lin(ks[0], ks[1], D_MODEL, D_MODEL)
    wk, bk = lin(ks[2], ks[3], D_MODEL, D_MODEL)
    wv, bv = lin(ks[4], ks[5], D_MODEL, D_MODEL)
    wo, bo = lin(ks[6], ks[7], D_MODEL, D_MODEL)
    w1, b1 = lin(ks[8], ks[9], D_MODEL, D_FF)
    w2, b2 = lin(ks[10], ks[11], D_FF, D_MODEL)
    g1 = jnp.ones((D_MODEL,), jnp.float32)
    be1 = jnp.zeros((D_MODEL,), jnp.float32)
    g2 = jnp.ones((D_MODEL,), jnp.float32)
    be2 = jnp.zeros((D_MODEL,), jnp.float32)
    return (wq, bq, wk, bk, wv, bv, wo, bo, w1, b1, w2, b2, g1, be1, g2, be2)


if __name__ == "__main__":
    key = jax.random.PRNGKey(0)
    kq, kk, kv, kp = jax.random.split(key, 4)
    q = jax.random.normal(kq, (B, S, D_MODEL), jnp.float32)
    k = jax.random.normal(kk, (B, S, D_MODEL), jnp.float32)
    v = jax.random.normal(kv, (B, S, D_MODEL), jnp.float32)
    params = init_params(kp)
    packed = pack_params(params)   # one-time parameter packing (scale folded into Wq/bq)

    out = transformer_encoder_layer(q, k, v, packed)
    out = jax.block_until_ready(out)

    ref = reference(q, k, v, params)
    assert out.shape == (B, S, D_MODEL)
    # Tolerance relaxed slightly vs. 1e-4 because the kernel uses the EUP approximate
    # reciprocal (pl.reciprocal(approx=True)) for the softmax denominator.
    err = jnp.max(jnp.abs(out - ref))
    assert jnp.allclose(out, ref, atol=5e-3, rtol=5e-3), f"max err {err}"
    print("KERNEL_OK")
</pallas_src>

<mosaic_0001>
module attributes {stable_mosaic.version = 11 : i64} {
  func.func @encoder_layer_kernel(%arg0: i32, %arg1: memref<16x96xf32, #tpu.memory_space<vmem>>, %arg2: memref<96x96xf32, #tpu.memory_space<vmem>>, %arg3: memref<128x64xf32, #tpu.memory_space<vmem>>, %arg4: memref<8x96xf32, #tpu.memory_space<vmem>>, %arg5: memref<16x32xf32, #tpu.memory_space<vmem>>) attributes {dimension_semantics = [#tpu.dimension_semantics<arbitrary>], iteration_bounds = array<i64: 1>, scalar_prefetch = 0 : i64, scratch_operands = 0 : i64, tpu.core_type = #tpu.core_type<tc>, window_params = [{pipeline_mode = #tpu.pipeline_mode<synchronous>, transform_indices = @transform_0, window_bounds = array<i64: 16, 96>}, {pipeline_mode = #tpu.pipeline_mode<synchronous>, transform_indices = @transform_1, window_bounds = array<i64: 96, 96>}, {pipeline_mode = #tpu.pipeline_mode<synchronous>, transform_indices = @transform_2, window_bounds = array<i64: 128, 64>}, {pipeline_mode = #tpu.pipeline_mode<synchronous>, transform_indices = @transform_3, window_bounds = array<i64: 8, 96>}, {pipeline_mode = #tpu.pipeline_mode<synchronous>, transform_indices = @transform_4, window_bounds = array<i64: 16, 32>}]} {
    %c0 = arith.constant 0 : index
    %c0_0 = arith.constant 0 : index
    %0 = vector.load %arg1[%c0, %c0_0] : memref<16x96xf32, #tpu.memory_space<vmem>>, vector<16x96xf32>
    %c0_1 = arith.constant 0 : index
    %c0_2 = arith.constant 0 : index
    %1 = vector.load %arg4[%c0_1, %c0_2] : memref<8x96xf32, #tpu.memory_space<vmem>>, vector<8x96xf32>
    %2 = vector.extract_strided_slice %1 {offsets = [0, 0], sizes = [1, 96], strides = [1, 1]} : vector<8x96xf32> to vector<1x96xf32>
    %3 = vector.extract_strided_slice %1 {offsets = [1, 0], sizes = [1, 32], strides = [1, 1]} : vector<8x96xf32> to vector<1x32xf32>
    %4 = vector.extract_strided_slice %1 {offsets = [2, 0], sizes = [1, 64], strides = [1, 1]} : vector<8x96xf32> to vector<1x64xf32>
    %5 = vector.extract_strided_slice %1 {offsets = [3, 0], sizes = [1, 32], strides = [1, 1]} : vector<8x96xf32> to vector<1x32xf32>
    %6 = vector.extract_strided_slice %1 {offsets = [4, 0], sizes = [1, 32], strides = [1, 1]} : vector<8x96xf32> to vector<1x32xf32>
    %7 = vector.extract_strided_slice %1 {offsets = [5, 0], sizes = [1, 32], strides = [1, 1]} : vector<8x96xf32> to vector<1x32xf32>
    %8 = vector.extract_strided_slice %1 {offsets = [6, 0], sizes = [1, 32], strides = [1, 1]} : vector<8x96xf32> to vector<1x32xf32>
    %9 = vector.extract_strided_slice %1 {offsets = [7, 0], sizes = [1, 32], strides = [1, 1]} : vector<8x96xf32> to vector<1x32xf32>
    %c0_3 = arith.constant 0 : index
    %c0_4 = arith.constant 0 : index
    %10 = vector.load %arg2[%c0_3, %c0_4] : memref<96x96xf32, #tpu.memory_space<vmem>>, vector<96x96xf32>
    %cst = arith.constant dense<0.000000e+00> : vector<16x96xf32>
    %11 = tpu.matmul %0, %10, %cst {dimension_numbers = #tpu.dot_dimension_numbers<[1], [0], [0], [1], [0, 0, 1, 1], [], []>} : vector<16x96xf32>, vector<96x96xf32>, vector<16x96xf32> -> vector<16x96xf32>
    %12 = vector.broadcast %2 : vector<1x96xf32> to vector<16x96xf32>
    %13 = arith.addf %11, %12 : vector<16x96xf32>
    %14 = vector.extract_strided_slice %13 {offsets = [0, 0], sizes = [16, 32], strides = [1, 1]} : vector<16x96xf32> to vector<16x32xf32>
    %15 = vector.shape_cast %14 : vector<16x32xf32> to vector<2x8x32xf32>
    %16 = vector.extract_strided_slice %13 {offsets = [0, 32], sizes = [16, 32], strides = [1, 1]} : vector<16x96xf32> to vector<16x32xf32>
    %17 = vector.shape_cast %16 : vector<16x32xf32> to vector<2x8x32xf32>
    %18 = vector.extract_strided_slice %13 {offsets = [0, 64], sizes = [16, 32], strides = [1, 1]} : vector<16x96xf32> to vector<16x32xf32>
    %19 = vector.shape_cast %18 : vector<16x32xf32> to vector<2x8x32xf32>
    %20 = vector.extract_strided_slice %15 {offsets = [0, 0, 0], sizes = [2, 8, 8], strides = [1, 1, 1]} : vector<2x8x32xf32> to vector<2x8x8xf32>
    %21 = vector.extract_strided_slice %17 {offsets = [0, 0, 0], sizes = [2, 8, 8], strides = [1, 1, 1]} : vector<2x8x32xf32> to vector<2x8x8xf32>
    %22 = vector.extract_strided_slice %19 {offsets = [0, 0, 0], sizes = [2, 8, 8], strides = [1, 1, 1]} : vector<2x8x32xf32> to vector<2x8x8xf32>
    "tpu.trace_start"() <{level = 10 : i32, message = "bqd,bkd->bqk"}> : () -> ()
    %cst_5 = arith.constant dense<0.000000e+00> : vector<2x8x8xf32>
    %23 = tpu.matmul %20, %21, %cst_5 {dimension_numbers = #tpu.dot_dimension_numbers<[2], [2], [1], [1], [0, 0, 0, 1, 1, 1], [0], [0]>} : vector<2x8x8xf32>, vector<2x8x8xf32>, vector<2x8x8xf32> -> vector<2x8x8xf32>
    "tpu.trace_stop"() : () -> ()
    %cst_6 = arith.constant dense<0xFF800000> : vector<2x8xf32>
    %24 = vector.multi_reduction <maximumf>, %23, %cst_6 [2] : vector<2x8x8xf32> to vector<2x8xf32>
    %25 = vector.shape_cast %24 : vector<2x8xf32> to vector<2x8x1xf32>
    %26 = vector.broadcast %25 : vector<2x8x1xf32> to vector<2x8x8xf32>
    %27 = arith.subf %23, %26 : vector<2x8x8xf32>
    %28 = math.exp %27 : vector<2x8x8xf32>
    %cst_7 = arith.constant dense<0.000000e+00> : vector<2x8xf32>
    %29 = vector.multi_reduction <add>, %28, %cst_7 [2] : vector<2x8x8xf32> to vector<2x8xf32>
    %30 = vector.shape_cast %29 : vector<2x8xf32> to vector<2x8x1xf32>
    %31 = tpu.reciprocal %30 {approx = true} : vector<2x8x1xf32> -> vector<2x8x1xf32>
    %32 = vector.broadcast %31 : vector<2x8x1xf32> to vector<2x8x8xf32>
    %33 = arith.mulf %28, %32 : vector<2x8x8xf32>
    "tpu.trace_start"() <{level = 10 : i32, message = "bqk,bkd->bqd"}> : () -> ()
    %cst_8 = arith.constant dense<0.000000e+00> : vector<2x8x8xf32>
    %34 = tpu.matmul %33, %22, %cst_8 {dimension_numbers = #tpu.dot_dimension_numbers<[2], [1], [1], [2], [0, 0, 0, 1, 1, 2], [0], [0]>} : vector<2x8x8xf32>, vector<2x8x8xf32>, vector<2x8x8xf32> -> vector<2x8x8xf32>
    "tpu.trace_stop"() : () -> ()
    %35 = vector.extract_strided_slice %15 {offsets = [0, 0, 8], sizes = [2, 8, 8], strides = [1, 1, 1]} : vector<2x8x32xf32> to vector<2x8x8xf32>
    %36 = vector.extract_strided_slice %17 {offsets = [0, 0, 8], sizes = [2, 8, 8], strides = [1, 1, 1]} : vector<2x8x32xf32> to vector<2x8x8xf32>
    %37 = vector.extract_strided_slice %19 {offsets = [0, 0, 8], sizes = [2, 8, 8], strides = [1, 1, 1]} : vector<2x8x32xf32> to vector<2x8x8xf32>
    "tpu.trace_start"() <{level = 10 : i32, message = "bqd,bkd->bqk"}> : () -> ()
    %cst_9 = arith.constant dense<0.000000e+00> : vector<2x8x8xf32>
    %38 = tpu.matmul %35, %36, %cst_9 {dimension_numbers = #tpu.dot_dimension_numbers<[2], [2], [1], [1], [0, 0, 0, 1, 1, 1], [0], [0]>} : vector<2x8x8xf32>, vector<2x8x8xf32>, vector<2x8x8xf32> -> vector<2x8x8xf32>
    "tpu.trace_stop"() : () -> ()
    %cst_10 = arith.constant dense<0xFF800000> : vector<2x8xf32>
    %39 = vector.multi_reduction <maximumf>, %38, %cst_10 [2] : vector<2x8x8xf32> to vector<2x8xf32>
    %40 = vector.shape_cast %39 : vector<2x8xf32> to vector<2x8x1xf32>
    %41 = vector.broadcast %40 : vector<2x8x1xf32> to vector<2x8x8xf32>
    %42 = arith.subf %38, %41 : vector<2x8x8xf32>
    %43 = math.exp %42 : vector<2x8x8xf32>
    %cst_11 = arith.constant dense<0.000000e+00> : vector<2x8xf32>
    %44 = vector.multi_reduction <add>, %43, %cst_11 [2] : vector<2x8x8xf32> to vector<2x8xf32>
    %45 = vector.shape_cast %44 : vector<2x8xf32> to vector<2x8x1xf32>
    %46 = tpu.reciprocal %45 {approx = true} : vector<2x8x1xf32> -> vector<2x8x1xf32>
    %47 = vector.broadcast %46 : vector<2x8x1xf32> to vector<2x8x8xf32>
    %48 = arith.mulf %43, %47 : vector<2x8x8xf32>
    "tpu.trace_start"() <{level = 10 : i32, message = "bqk,bkd->bqd"}> : () -> ()
    %cst_12 = arith.constant dense<0.000000e+00> : vector<2x8x8xf32>
    %49 = tpu.matmul %48, %37, %cst_12 {dimension_numbers = #tpu.dot_dimension_numbers<[2], [1], [1], [2], [0, 0, 0, 1, 1, 2], [0], [0]>} : vector<2x8x8xf32>, vector<2x8x8xf32>, vector<2x8x8xf32> -> vector<2x8x8xf32>
    "tpu.trace_stop"() : () -> ()
    %50 = vector.extract_strided_slice %15 {offsets = [0, 0, 16], sizes = [2, 8, 8], strides = [1, 1, 1]} : vector<2x8x32xf32> to vector<2x8x8xf32>
    %51 = vector.extract_strided_slice %17 {offsets = [0, 0, 16], sizes = [2, 8, 8], strides = [1, 1, 1]} : vector<2x8x32xf32> to vector<2x8x8xf32>
    %52 = vector.extract_strided_slice %19 {offsets = [0, 0, 16], sizes = [2, 8, 8], strides = [1, 1, 1]} : vector<2x8x32xf32> to vector<2x8x8xf32>
    "tpu.trace_start"() <{level = 10 : i32, message = "bqd,bkd->bqk"}> : () -> ()
    %cst_13 = arith.constant dense<0.000000e+00> : vector<2x8x8xf32>
    %53 = tpu.matmul %50, %51, %cst_13 {dimension_numbers = #tpu.dot_dimension_numbers<[2], [2], [1], [1], [0, 0, 0, 1, 1, 1], [0], [0]>} : vector<2x8x8xf32>, vector<2x8x8xf32>, vector<2x8x8xf32> -> vector<2x8x8xf32>
    "tpu.trace_stop"() : () -> ()
    %cst_14 = arith.constant dense<0xFF800000> : vector<2x8xf32>
    %54 = vector.multi_reduction <maximumf>, %53, %cst_14 [2] : vector<2x8x8xf32> to vector<2x8xf32>
    %55 = vector.shape_cast %54 : vector<2x8xf32> to vector<2x8x1xf32>
    %56 = vector.broadcast %55 : vector<2x8x1xf32> to vector<2x8x8xf32>
    %57 = arith.subf %53, %56 : vector<2x8x8xf32>
    %58 = math.exp %57 : vector<2x8x8xf32>
    %cst_15 = arith.constant dense<0.000000e+00> : vector<2x8xf32>
    %59 = vector.multi_reduction <add>, %58, %cst_15 [2] : vector<2x8x8xf32> to vector<2x8xf32>
    %60 = vector.shape_cast %59 : vector<2x8xf32> to vector<2x8x1xf32>
    %61 = tpu.reciprocal %60 {approx = true} : vector<2x8x1xf32> -> vector<2x8x1xf32>
    %62 = vector.broadcast %61 : vector<2x8x1xf32> to vector<2x8x8xf32>
    %63 = arith.mulf %58, %62 : vector<2x8x8xf32>
    "tpu.trace_start"() <{level = 10 : i32, message = "bqk,bkd->bqd"}> : () -> ()
    %cst_16 = arith.constant dense<0.000000e+00> : vector<2x8x8xf32>
    %64 = tpu.matmul %63, %52, %cst_16 {dimension_numbers = #tpu.dot_dimension_numbers<[2], [1], [1], [2], [0, 0, 0, 1, 1, 2], [0], [0]>} : vector<2x8x8xf32>, vector<2x8x8xf32>, vector<2x8x8xf32> -> vector<2x8x8xf32>
    "tpu.trace_stop"() : () -> ()
    %65 = vector.extract_strided_slice %15 {offsets = [0, 0, 24], sizes = [2, 8, 8], strides = [1, 1, 1]} : vector<2x8x32xf32> to vector<2x8x8xf32>
    %66 = vector.extract_strided_slice %17 {offsets = [0, 0, 24], sizes = [2, 8, 8], strides = [1, 1, 1]} : vector<2x8x32xf32> to vector<2x8x8xf32>
    %67 = vector.extract_strided_slice %19 {offsets = [0, 0, 24], sizes = [2, 8, 8], strides = [1, 1, 1]} : vector<2x8x32xf32> to vector<2x8x8xf32>
    "tpu.trace_start"() <{level = 10 : i32, message = "bqd,bkd->bqk"}> : () -> ()
    %cst_17 = arith.constant dense<0.000000e+00> : vector<2x8x8xf32>
    %68 = tpu.matmul %65, %66, %cst_17 {dimension_numbers = #tpu.dot_dimension_numbers<[2], [2], [1], [1], [0, 0, 0, 1, 1, 1], [0], [0]>} : vector<2x8x8xf32>, vector<2x8x8xf32>, vector<2x8x8xf32> -> vector<2x8x8xf32>
    "tpu.trace_stop"() : () -> ()
    %cst_18 = arith.constant dense<0xFF800000> : vector<2x8xf32>
    %69 = vector.multi_reduction <maximumf>, %68, %cst_18 [2] : vector<2x8x8xf32> to vector<2x8xf32>
    %70 = vector.shape_cast %69 : vector<2x8xf32> to vector<2x8x1xf32>
    %71 = vector.broadcast %70 : vector<2x8x1xf32> to vector<2x8x8xf32>
    %72 = arith.subf %68, %71 : vector<2x8x8xf32>
    %73 = math.exp %72 : vector<2x8x8xf32>
    %cst_19 = arith.constant dense<0.000000e+00> : vector<2x8xf32>
    %74 = vector.multi_reduction <add>, %73, %cst_19 [2] : vector<2x8x8xf32> to vector<2x8xf32>
    %75 = vector.shape_cast %74 : vector<2x8xf32> to vector<2x8x1xf32>
    %76 = tpu.reciprocal %75 {approx = true} : vector<2x8x1xf32> -> vector<2x8x1xf32>
    %77 = vector.broadcast %76 : vector<2x8x1xf32> to vector<2x8x8xf32>
    %78 = arith.mulf %73, %77 : vector<2x8x8xf32>
    "tpu.trace_start"() <{level = 10 : i32, message = "bqk,bkd->bqd"}> : () -> ()
    %cst_20 = arith.constant dense<0.000000e+00> : vector<2x8x8xf32>
    %79 = tpu.matmul %78, %67, %cst_20 {dimension_numbers = #tpu.dot_dimension_numbers<[2], [1], [1], [2], [0, 0, 0, 1, 1, 2], [0], [0]>} : vector<2x8x8xf32>, vector<2x8x8xf32>, vector<2x8x8xf32> -> vector<2x8x8xf32>
    "tpu.trace_stop"() : () -> ()
    %80 = tpu.concatenate %34, %49, %64, %79 in 2 : vector<2x8x8xf32>, vector<2x8x8xf32>, vector<2x8x8xf32>, vector<2x8x8xf32> -> vector<2x8x32xf32>
    %81 = vector.shape_cast %80 : vector<2x8x32xf32> to vector<16x32xf32>
    %c0_21 = arith.constant 0 : index
    %c0_22 = arith.constant 0 : index
    %82 = vector.load %arg3[%c0_21, %c0_22] : memref<128x64xf32, #tpu.memory_space<vmem>>, vector<32x32xf32>
    %cst_23 = arith.constant dense<0.000000e+00> : vector<16x32xf32>
    %83 = tpu.matmul %81, %82, %cst_23 {dimension_numbers = #tpu.dot_dimension_numbers<[1], [0], [0], [1], [0, 0, 1, 1], [], []>} : vector<16x32xf32>, vector<32x32xf32>, vector<16x32xf32> -> vector<16x32xf32>
    %84 = vector.broadcast %3 : vector<1x32xf32> to vector<16x32xf32>
    %85 = arith.addf %83, %84 : vector<16x32xf32>
    %86 = vector.extract_strided_slice %0 {offsets = [0, 0], sizes = [16, 32], strides = [1, 1]} : vector<16x96xf32> to vector<16x32xf32>
    %87 = arith.addf %86, %85 : vector<16x32xf32>
    %cst_24 = arith.constant dense<0.000000e+00> : vector<16xf32>
    %88 = vector.multi_reduction <add>, %87, %cst_24 [1] : vector<16x32xf32> to vector<16xf32>
    %89 = vector.shape_cast %88 : vector<16xf32> to vector<16x1xf32>
    %cst_25 = arith.constant 3.200000e+01 : f32
    %90 = vector.broadcast %cst_25 : f32 to vector<16x1xf32>
    %91 = arith.divf %89, %90 : vector<16x1xf32>
    %92 = vector.broadcast %91 : vector<16x1xf32> to vector<16x32xf32>
    %93 = arith.subf %87, %92 : vector<16x32xf32>
    %94 = arith.mulf %93, %93 : vector<16x32xf32>
    %cst_26 = arith.constant dense<0.000000e+00> : vector<16xf32>
    %95 = vector.multi_reduction <add>, %94, %cst_26 [1] : vector<16x32xf32> to vector<16xf32>
    %96 = vector.shape_cast %95 : vector<16xf32> to vector<16x1xf32>
    %cst_27 = arith.constant 3.200000e+01 : f32
    %97 = vector.broadcast %cst_27 : f32 to vector<16x1xf32>
    %98 = arith.divf %96, %97 : vector<16x1xf32>
    %99 = vector.broadcast %91 : vector<16x1xf32> to vector<16x32xf32>
    %100 = arith.subf %87, %99 : vector<16x32xf32>
    %cst_28 = arith.constant 9.99999974E-6 : f32
    %101 = vector.broadcast %cst_28 : f32 to vector<16x1xf32>
    %102 = arith.addf %98, %101 : vector<16x1xf32>
    %103 = math.rsqrt %102 : vector<16x1xf32>
    %104 = vector.broadcast %103 : vector<16x1xf32> to vector<16x32xf32>
    %105 = arith.mulf %100, %104 : vector<16x32xf32>
    %106 = vector.broadcast %6 : vector<1x32xf32> to vector<16x32xf32>
    %107 = arith.mulf %105, %106 : vector<16x32xf32>
    %108 = vector.broadcast %7 : vector<1x32xf32> to vector<16x32xf32>
    %109 = arith.addf %107, %108 : vector<16x32xf32>
    %c32 = arith.constant 32 : index
    %c0_29 = arith.constant 0 : index
    %110 = vector.load %arg3[%c32, %c0_29] : memref<128x64xf32, #tpu.memory_space<vmem>>, vector<32x64xf32>
    %cst_30 = arith.constant dense<0.000000e+00> : vector<16x64xf32>
    %111 = tpu.matmul %109, %110, %cst_30 {dimension_numbers = #tpu.dot_dimension_numbers<[1], [0], [0], [1], [0, 0, 1, 1], [], []>} : vector<16x32xf32>, vector<32x64xf32>, vector<16x64xf32> -> vector<16x64xf32>
    %112 = vector.broadcast %4 : vector<1x64xf32> to vector<16x64xf32>
    %113 = arith.addf %111, %112 : vector<16x64xf32>
    %cst_31 = arith.constant 0.000000e+00 : f32
    %114 = vector.broadcast %cst_31 : f32 to vector<16x64xf32>
    %115 = arith.maximumf %113, %114 : vector<16x64xf32>
    %c64 = arith.constant 64 : index
    %c0_32 = arith.constant 0 : index
    %116 = vector.load %arg3[%c64, %c0_32] : memref<128x64xf32, #tpu.memory_space<vmem>>, vector<64x32xf32>
    %cst_33 = arith.constant dense<0.000000e+00> : vector<16x32xf32>
    %117 = tpu.matmul %115, %116, %cst_33 {dimension_numbers = #tpu.dot_dimension_numbers<[1], [0], [0], [1], [0, 0, 1, 1], [], []>} : vector<16x64xf32>, vector<64x32xf32>, vector<16x32xf32> -> vector<16x32xf32>
    %118 = vector.broadcast %5 : vector<1x32xf32> to vector<16x32xf32>
    %119 = arith.addf %117, %118 : vector<16x32xf32>
    %120 = arith.addf %109, %119 : vector<16x32xf32>
    %cst_34 = arith.constant dense<0.000000e+00> : vector<16xf32>
    %121 = vector.multi_reduction <add>, %120, %cst_34 [1] : vector<16x32xf32> to vector<16xf32>
    %122 = vector.shape_cast %121 : vector<16xf32> to vector<16x1xf32>
    %cst_35 = arith.constant 3.200000e+01 : f32
    %123 = vector.broadcast %cst_35 : f32 to vector<16x1xf32>
    %124 = arith.divf %122, %123 : vector<16x1xf32>
    %125 = vector.broadcast %124 : vector<16x1xf32> to vector<16x32xf32>
    %126 = arith.subf %120, %125 : vector<16x32xf32>
    %127 = arith.mulf %126, %126 : vector<16x32xf32>
    %cst_36 = arith.constant dense<0.000000e+00> : vector<16xf32>
    %128 = vector.multi_reduction <add>, %127, %cst_36 [1] : vector<16x32xf32> to vector<16xf32>
    %129 = vector.shape_cast %128 : vector<16xf32> to vector<16x1xf32>
    %cst_37 = arith.constant 3.200000e+01 : f32
    %130 = vector.broadcast %cst_37 : f32 to vector<16x1xf32>
    %131 = arith.divf %129, %130 : vector<16x1xf32>
    %132 = vector.broadcast %124 : vector<16x1xf32> to vector<16x32xf32>
    %133 = arith.subf %120, %132 : vector<16x32xf32>
    %cst_38 = arith.constant 9.99999974E-6 : f32
    %134 = vector.broadcast %cst_38 : f32 to vector<16x1xf32>
    %135 = arith.addf %131, %134 : vector<16x1xf32>
    %136 = math.rsqrt %135 : vector<16x1xf32>
    %137 = vector.broadcast %136 : vector<16x1xf32> to vector<16x32xf32>
    %138 = arith.mulf %133, %137 : vector<16x32xf32>
    %139 = vector.broadcast %8 : vector<1x32xf32> to vector<16x32xf32>
    %140 = arith.mulf %138, %139 : vector<16x32xf32>
    %141 = vector.broadcast %9 : vector<1x32xf32> to vector<16x32xf32>
    %142 = arith.addf %140, %141 : vector<16x32xf32>
    %c0_39 = arith.constant 0 : index
    %c0_40 = arith.constant 0 : index
    %143 = vector.load %arg5[%c0_39, %c0_40] : memref<16x32xf32, #tpu.memory_space<vmem>>, vector<16x32xf32>
    tpu.vector_store %arg5[%c0_39, %c0_40], %142 {strides = array<i32>} : memref<16x32xf32, #tpu.memory_space<vmem>>, vector<16x32xf32>,
    return
  }
  func.func @transform_0(%arg0: i32) -> (i32, i32) {
    %c0_i32 = arith.constant 0 : i32
    %c0_i32_0 = arith.constant 0 : i32
    %c0_i32_1 = arith.constant 0 : i32
    return %c0_i32, %c0_i32_0 : i32, i32
  }
  func.func @transform_1(%arg0: i32) -> (i32, i32) {
    %c0_i32 = arith.constant 0 : i32
    %c0_i32_0 = arith.constant 0 : i32
    %c0_i32_1 = arith.constant 0 : i32
    return %c0_i32, %c0_i32_0 : i32, i32
  }
  func.func @transform_2(%arg0: i32) -> (i32, i32) {
    %c0_i32 = arith.constant 0 : i32
    %c0_i32_0 = arith.constant 0 : i32
    %c0_i32_1 = arith.constant 0 : i32
    return %c0_i32, %c0_i32_0 : i32, i32
  }
  func.func @transform_3(%arg0: i32) -> (i32, i32) {
    %c0_i32 = arith.constant 0 : i32
    %c0_i32_0 = arith.constant 0 : i32
    %c0_i32_1 = arith.constant 0 : i32
    return %c0_i32, %c0_i32_0 : i32, i32
  }
  func.func @transform_4(%arg0: i32) -> (i32, i32) {
    %c0_i32 = arith.constant 0 : i32
    %c0_i32_0 = arith.constant 0 : i32
    %c0_i32_1 = arith.constant 0 : i32
    return %c0_i32, %c0_i32_0 : i32, i32
  }
}

</mosaic_0001>

<llo_original>
// kernel: tpu_custom_call.1
$region0: #{tpu_custom_call.1}
  #allocation0 [shape = 'u32[]', space=smem, size = 0x4, offset = 0x4, fixed_abs, tag = 'smem constant byte address 0x4 - core index']
  #allocation1 [shape = 'u32[144,128]{1,0:T(1,128)}', space=vmem, size = 0x12000, scoped, tag = 'internal scratch']
  %s0 = inlined_call_operand.vmem [shape: f32[16,96], index: 0, kind: input, shape index: {}]
  %s1 = inlined_call_operand.vmem [shape: f32[96,96], index: 1, kind: input, shape index: {}]
  %s2 = inlined_call_operand.vmem [shape: f32[128,64], index: 2, kind: input, shape index: {}]
  %s3 = inlined_call_operand.vmem [shape: f32[8,96], index: 3, kind: input, shape index: {}]
  %s4 = inlined_call_operand.hbm [shape: f32[16,32], index: 4, kind: output, shape index: {}]
  %s5 = sld [smem:[#allocation0]]
  $region26: #{tpu_custom_call.1} parent=0
    _
  %s7 = ssub.s32 1, %s5
  %s8 = scalar_select 0, %s7, %s5
  $region1: #{tpu_custom_call.1} parent=0
    #allocation2 [shape = 'u8[8192]{0}', space=vmem, size = 0x2000, scoped, tag = 'output window, operand 0, single buffered']
    #allocation3 [shape = 's32[1]{0}', space=sflag, size = 0x4, scoped, tag = 'scoped memory for tpu_custom_call.1']
    %9 = vsyncpa [#allocation3], 0
    // Predicated region
    $region2: #{tpu_custom_call.1} parent=1 // pred_check
      _
    $region3: #{tpu_custom_call.1} parent=1 // pred_check_branch
      %11 = sbr.rel (0) target = $region5
    $region4: #{tpu_custom_call.1} parent=1 // pred_region
      _
    $region5: #{tpu_custom_call.1} parent=1 // pred_fallthru
      _
    // Predicated region
    $region6: #{tpu_custom_call.1} parent=1 // pred_check
      _
    $region7: #{tpu_custom_call.1} parent=1 // pred_check_branch
      %13 = sbr.rel (0) target = $region9
    $region8: #{tpu_custom_call.1} parent=1 // pred_region
      _
    $region9: #{tpu_custom_call.1} parent=1 // pred_fallthru
      _
    // Predicated region
    $region10: #{tpu_custom_call.1} parent=1 // pred_check
      _
    $region11: #{tpu_custom_call.1} parent=1 // pred_check_branch
      %15 = sbr.rel (0) target = $region13
    $region12: #{tpu_custom_call.1} parent=1 // pred_region
      _
    $region13: #{tpu_custom_call.1} parent=1 // pred_fallthru
      _
    // Predicated region
    $region14: #{tpu_custom_call.1} parent=1 // pred_check
      _
    $region15: #{tpu_custom_call.1} parent=1 // pred_check_branch
      %17 = sbr.rel (0) target = $region17
    $region16: #{tpu_custom_call.1} parent=1 // pred_region
      _
    $region17: #{tpu_custom_call.1} parent=1 // pred_fallthru
      _
    %v18 = vld [vmem:[%s0] sm:$0xff]
    %v19 = vld [vmem:[%s0 + $0x8] sm:$0xff]
    %v20 = vld [vmem:[%s3] sm:$0xff]
    %v21 = vld [vmem:[%s1] sm:$0xff]
    %v22 = vld [vmem:[%s1 + $0x8] sm:$0xff]
    %v23 = vld [vmem:[%s1 + $0x10] sm:$0xff]
    %v24 = vld [vmem:[%s1 + $0x18] sm:$0xff]
    %v25 = vld [vmem:[%s1 + $0x20] sm:$0xff]
    %v26 = vld [vmem:[%s1 + $0x28] sm:$0xff]
    %v27 = vld [vmem:[%s1 + $0x30] sm:$0xff]
    %v28 = vld [vmem:[%s1 + $0x38] sm:$0xff]
    %v29 = vld [vmem:[%s1 + $0x40] sm:$0xff]
    %v30 = vld [vmem:[%s1 + $0x48] sm:$0xff]
    %v31 = vld [vmem:[%s1 + $0x50] sm:$0xff]
    %v32 = vld [vmem:[%s1 + $0x58] sm:$0xff]
    %v33 = vlaneseq
    %v34 = vshrl.u32 %v33, 7
    %v35 = vsub.s32 0, %v34
    %v36 = vrot.slane %v20, %v35
    %vm37 = vcmask 785408
    %v39 = vsel %vm37, %v18, 0
    %v42 = vsel %vm37, %v19, 0
    %44 = vmatprep.subr.mxu0 0.0
    %45 = vmatpush1.msra.mxu0 %v21
    %46 = vmatprep.subr.mxu0 0.0
    %47 = vmatpush1.msra.mxu0 %v22
    %48 = vmatprep.subr.mxu0 0.0
    %49 = vmatpush1.msra.mxu0 %v23
    %50 = vmatprep.subr.mxu0 0.0
    %51 = vmatpush1.msra.mxu0 %v24
    %52 = vmatprep.subr.mxu0 0.0
    %53 = vmatpush1.msra.mxu0 %v25
    %54 = vmatprep.subr.mxu0 0.0
    %55 = vmatpush1.msra.mxu0 %v26
    %56 = vmatprep.subr.mxu0 0.0
    %57 = vmatpush1.msra.mxu0 %v27
    %58 = vmatprep.subr.mxu0 0.0
    %59 = vmatpush1.msra.mxu0 %v28
    %60 = vmatprep.subr.mxu0 0.0
    %61 = vmatpush1.msra.mxu0 %v29
    %62 = vmatprep.subr.mxu0 0.0
    %63 = vmatpush1.msra.mxu0 %v30
    %64 = vmatprep.subr.mxu0 0.0
    %65 = vmatpush1.msra.mxu0 %v31
    %66 = vmatprep.subr.mxu0 0.0
    %67 = vmatpush1.msra.mxu0 %v32
    %68 = vmatprep.subr.mxu0 0.0
    %69 = vmatpush1.msra.mxu0 0.0
    %70 = vmatprep.subr.mxu0 0.0
    %71 = vmatpush1.msra.mxu0 0.0
    %72 = vmatprep.subr.mxu0 0.0
    %73 = vmatpush1.msra.mxu0 0.0
    %74 = vmatprep.subr.mxu0 0.0
    %75 = vmatpush1.msra.mxu0 0.0
    %76 = vmatprep.subr.mxu0 0.0
    %77 = vmatpush1.msra.mxu0 0.0
    %78 = vmatprep.subr.mxu0 0.0
    %79 = vmatpush1.msra.mxu0 0.0
    %80 = vmatprep.subr.mxu0 0.0
    %81 = vmatpush1.msra.mxu0 0.0
    %82 = vmatprep.subr.mxu0 0.0
    %83 = vmatpush1.msra.mxu0 0.0
    %84 = vmatprep.subr.mxu0 0.0
    %85 = vmatpush1.msra.mxu0 0.0
    %86 = vmatprep.subr.mxu0 0.0
    %87 = vmatpush1.msra.mxu0 0.0
    %88 = vmatprep.subr.mxu0 0.0
    %89 = vmatpush1.msra.mxu0 0.0
    %90 = vmatprep.subr.mxu0 0.0
    %91 = vmatpush1.msra.mxu0 0.0
    %92 = vmatprep.subr.mxu0 0.0
    %93 = vmatpush1.msra.mxu0 0.0
    %94 = vmatprep.subr.mxu0 0.0
    %95 = vmatpush1.msra.mxu0 0.0
    %96 = vmatprep.subr.mxu0 0.0
    %97 = vmatpush1.msra.mxu0 0.0
    %98 = vmatprep.subr.mxu0 0.0
    %99 = vmatpush1.msra.mxu0 0.0
    %100 = vmatprep.subr.mxu0 0.0
    %101 = vmatpush1.msra.mxu0 0.0
    %102 = vmatprep.subr.mxu0 0.0
    %103 = vmatpush1.msra.mxu0 0.0
    %104 = vmatprep.subr.mxu0 0.0
    %105 = vmatpush1.msra.mxu0 0.0
    %106 = vmatprep.subr.mxu0 0.0
    %107 = vmatpush1.msra.mxu0 0.0
    %108 = vmatprep.mubr.f32.mxu0 0.0
    %109 = vmatmul.mubr.f32.gmra.mrb[0].mxu0 %v39
    %v110 = vpop.f32.mrb[0].mxu0
    %v111 = vadd.f32 %v36, %v110
    %v112 = vpop.f32.mrb[0].mxu0
    %113 = vmatprep.mubr.f32.mxu0 0.0
    %114 = vmatmul.mubr.f32.gmra.mrb[0].mxu0 %v42
    %v115 = vpop.f32.mrb[0].mxu0
    %v116 = vadd.f32 %v36, %v115
    %v117 = vpop.f32.mrb[0].mxu0
    %118 = vdwg.mxu0
    %120 = vrot.lane.b32.xlu0 %v111, 96
    %v121 = vpop.permute.xlu0 %120
    %vm122 = vcmask 64512
    %v123 = vsel %vm122, %v111, 0
    %v125 = vsel %vm122, %v121, 0
    %127 = vmatprep.subr.mxu0 0.0
    %128 = vmatpush1.xpose.msra.mxu0 %v125
    %129 = vmatprep.subr.mxu0 0.0
    %130 = vmatpush1.xpose.msra.mxu0 0.0
    %131 = vmatprep.subr.mxu0 0.0
    %132 = vmatpush1.xpose.msra.mxu0 0.0
    %133 = vmatprep.subr.mxu0 0.0
    %134 = vmatpush1.xpose.msra.mxu0 0.0
    %135 = vmatprep.subr.mxu0 0.0
    %136 = vmatpush1.xpose.msra.mxu0 0.0
    %137 = vmatprep.subr.mxu0 0.0
    %138 = vmatpush1.xpose.msra.mxu0 0.0
    %139 = vmatprep.subr.mxu0 0.0
    %140 = vmatpush1.xpose.msra.mxu0 0.0
    %141 = vmatprep.subr.mxu0 0.0
    %142 = vmatpush1.xpose.msra.mxu0 0.0
    %143 = vmatprep.subr.mxu0 0.0
    %144 = vmatpush1.xpose.msra.mxu0 0.0
    %145 = vmatprep.subr.mxu0 0.0
    %146 = vmatpush1.xpose.msra.mxu0 0.0
    %147 = vmatprep.subr.mxu0 0.0
    %148 = vmatpush1.xpose.msra.mxu0 0.0
    %149 = vmatprep.subr.mxu0 0.0
    %150 = vmatpush1.xpose.msra.mxu0 0.0
    %151 = vmatprep.subr.mxu0 0.0
    %152 = vmatpush1.xpose.msra.mxu0 0.0
    %153 = vmatprep.subr.mxu0 0.0
    %154 = vmatpush1.xpose.msra.mxu0 0.0
    %155 = vmatprep.subr.mxu0 0.0
    %156 = vmatpush1.xpose.msra.mxu0 0.0
    %157 = vmatprep.subr.mxu0 0.0
    %158 = vmatpush1.xpose.msra.mxu0 0.0
    %159 = vmatprep.subr.mxu0 0.0
    %160 = vmatpush1.xpose.msra.mxu0 0.0
    %161 = vmatprep.subr.mxu0 0.0
    %162 = vmatpush1.xpose.msra.mxu0 0.0
    %163 = vmatprep.subr.mxu0 0.0
    %164 = vmatpush1.xpose.msra.mxu0 0.0
    %165 = vmatprep.subr.mxu0 0.0
    %166 = vmatpush1.xpose.msra.mxu0 0.0
    %167 = vmatprep.subr.mxu0 0.0
    %168 = vmatpush1.xpose.msra.mxu0 0.0
    %169 = vmatprep.subr.mxu0 0.0
    %170 = vmatpush1.xpose.msra.mxu0 0.0
    %171 = vmatprep.subr.mxu0 0.0
    %172 = vmatpush1.xpose.msra.mxu0 0.0
    %173 = vmatprep.subr.mxu0 0.0
    %174 = vmatpush1.xpose.msra.mxu0 0.0
    %175 = vmatprep.subr.mxu0 0.0
    %176 = vmatpush1.xpose.msra.mxu0 0.0
    %177 = vmatprep.subr.mxu0 0.0
    %178 = vmatpush1.xpose.msra.mxu0 0.0
    %179 = vmatprep.subr.mxu0 0.0
    %180 = vmatpush1.xpose.msra.mxu0 0.0
    %181 = vmatprep.subr.mxu0 0.0
    %182 = vmatpush1.xpose.msra.mxu0 0.0
    %183 = vmatprep.subr.mxu0 0.0
    %184 = vmatpush1.xpose.msra.mxu0 0.0
    %185 = vmatprep.subr.mxu0 0.0
    %186 = vmatpush1.xpose.msra.mxu0 0.0
    %187 = vmatprep.subr.mxu0 0.0
    %188 = vmatpush1.xpose.msra.mxu0 0.0
    %189 = vmatprep.subr.mxu0 0.0
    %190 = vmatpush1.xpose.msra.mxu0 0.0
    %191 = vmatprep.mubr.f32.mxu0 0.0
    %192 = vmatmul.mubr.f32.gmra.mrb[0].mxu0 %v123
    %v193 = vpop.f32.mrb[0].mxu0
    %v194 = vadd.f32 0.0, %v193
    %v195 = vpop.f32.mrb[0].mxu0
    %196 = vdwg.mxu0
    %198 = vrot.lane.b32.xlu0 %v116, 96
    %v199 = vpop.permute.xlu0 %198
    %v200 = vsel %vm122, %v116, 0
    %v202 = vsel %vm122, %v199, 0
    %204 = vmatprep.subr.mxu0 0.0
    %205 = vmatpush1.xpose.msra.mxu0 %v202
    %206 = vmatprep.subr.mxu0 0.0
    %207 = vmatpush1.xpose.msra.mxu0 0.0
    %208 = vmatprep.subr.mxu0 0.0
    %209 = vmatpush1.xpose.msra.mxu0 0.0
    %210 = vmatprep.subr.mxu0 0.0
    %211 = vmatpush1.xpose.msra.mxu0 0.0
    %212 = vmatprep.subr.mxu0 0.0
    %213 = vmatpush1.xpose.msra.mxu0 0.0
    %214 = vmatprep.subr.mxu0 0.0
    %215 = vmatpush1.xpose.msra.mxu0 0.0
    %216 = vmatprep.subr.mxu0 0.0
    %217 = vmatpush1.xpose.msra.mxu0 0.0
    %218 = vmatprep.subr.mxu0 0.0
    %219 = vmatpush1.xpose.msra.mxu0 0.0
    %220 = vmatprep.subr.mxu0 0.0
    %221 = vmatpush1.xpose.msra.mxu0 0.0
    %222 = vmatprep.subr.mxu0 0.0
    %223 = vmatpush1.xpose.msra.mxu0 0.0
    %224 = vmatprep.subr.mxu0 0.0
    %225 = vmatpush1.xpose.msra.mxu0 0.0
    %226 = vmatprep.subr.mxu0 0.0
    %227 = vmatpush1.xpose.msra.mxu0 0.0
    %228 = vmatprep.subr.mxu0 0.0
    %229 = vmatpush1.xpose.msra.mxu0 0.0
    %230 = vmatprep.subr.mxu0 0.0
    %231 = vmatpush1.xpose.msra.mxu0 0.0
    %232 = vmatprep.subr.mxu0 0.0
    %233 = vmatpush1.xpose.msra.mxu0 0.0
    %234 = vmatprep.subr.mxu0 0.0
    %235 = vmatpush1.xpose.msra.mxu0 0.0
    %236 = vmatprep.subr.mxu0 0.0
    %237 = vmatpush1.xpose.msra.mxu0 0.0
    %238 = vmatprep.subr.mxu0 0.0
    %239 = vmatpush1.xpose.msra.mxu0 0.0
    %240 = vmatprep.subr.mxu0 0.0
    %241 = vmatpush1.xpose.msra.mxu0 0.0
    %242 = vmatprep.subr.mxu0 0.0
    %243 = vmatpush1.xpose.msra.mxu0 0.0
    %244 = vmatprep.subr.mxu0 0.0
    %245 = vmatpush1.xpose.msra.mxu0 0.0
    %246 = vmatprep.subr.mxu0 0.0
    %247 = vmatpush1.xpose.msra.mxu0 0.0
    %248 = vmatprep.subr.mxu0 0.0
    %249 = vmatpush1.xpose.msra.mxu0 0.0
    %250 = vmatprep.subr.mxu0 0.0
    %251 = vmatpush1.xpose.msra.mxu0 0.0
    %252 = vmatprep.subr.mxu0 0.0
    %253 = vmatpush1.xpose.msra.mxu0 0.0
    %254 = vmatprep.subr.mxu0 0.0
    %255 = vmatpush1.xpose.msra.mxu0 0.0
    %256 = vmatprep.subr.mxu0 0.0
    %257 = vmatpush1.xpose.msra.mxu0 0.0
    %258 = vmatprep.subr.mxu0 0.0
    %259 = vmatpush1.xpose.msra.mxu0 0.0
    %260 = vmatprep.subr.mxu0 0.0
    %261 = vmatpush1.xpose.msra.mxu0 0.0
    %262 = vmatprep.subr.mxu0 0.0
    %263 = vmatpush1.xpose.msra.mxu0 0.0
    %264 = vmatprep.subr.mxu0 0.0
    %265 = vmatpush1.xpose.msra.mxu0 0.0
    %266 = vmatprep.subr.mxu0 0.0
    %267 = vmatpush1.xpose.msra.mxu0 0.0
    %268 = vmatprep.mubr.f32.mxu0 0.0
    %269 = vmatmul.mubr.f32.gmra.mrb[0].mxu0 %v200
    %v270 = vpop.f32.mrb[0].mxu0
    %v271 = vadd.f32 0.0, %v270
    %v272 = vpop.f32.mrb[0].mxu0
    %273 = vdwg.mxu0
    %v274 = vsel %vm122, %v194, -inf
    %275 = vmax.xlane.f32.xlu0 %v274
    %v276 = vpop.xlane.xlu0 %275
    %v277 = vsel %vm122, %v271, -inf
    %278 = vmax.xlane.f32.xlu0 %v277
    %v279 = vpop.xlane.xlu0 %278
    %v280 = vsub.f32 %v194, %v276
    %v281 = vsub.f32 %v271, %v279
    %v282 = vmul.f32 %v280, 1.442695
    %v283 = vpow.pop %v282
    %v284 = vmul.f32 %v281, 1.442695
    %v285 = vpow.pop %v284
    %v286 = vsel %vm122, %v283, 0.0
    %287 = vadd.xlane.f32.xlu0 %v286
    %v288 = vpop.xlane.xlu0 %287
    %v289 = vsel %vm122, %v285, 0.0
    %290 = vadd.xlane.f32.xlu0 %v289
    %v291 = vpop.xlane.xlu0 %290
    %v292 = vrcp.pop %v288
    %v293 = vrcp.pop %v291
    %v294 = vmul.f32 %v283, %v292
    %v295 = vmul.f32 %v285, %v293
    %296 = vrot.lane.b32.xlu0 %v111, 64
    %v297 = vpop.permute.xlu0 %296
    %v300 = vsel %vm122, %v294, 0
    %302 = vmatprep.subr.mxu0 0.0
    %303 = vmatpush1.msra.mxu0 %v297
    %304 = vmatprep.subr.mxu0 0.0
    %305 = vmatpush1.msra.mxu0 0.0
    %306 = vmatprep.subr.mxu0 0.0
    %307 = vmatpush1.msra.mxu0 0.0
    %308 = vmatprep.subr.mxu0 0.0
    %309 = vmatpush1.msra.mxu0 0.0
    %310 = vmatprep.subr.mxu0 0.0
    %311 = vmatpush1.msra.mxu0 0.0
    %312 = vmatprep.subr.mxu0 0.0
    %313 = vmatpush1.msra.mxu0 0.0
    %314 = vmatprep.subr.mxu0 0.0
    %315 = vmatpush1.msra.mxu0 0.0
    %316 = vmatprep.subr.mxu0 0.0
    %317 = vmatpush1.msra.mxu0 0.0
    %318 = vmatprep.subr.mxu0 0.0
    %319 = vmatpush1.msra.mxu0 0.0
    %320 = vmatprep.subr.mxu0 0.0
    %321 = vmatpush1.msra.mxu0 0.0
    %322 = vmatprep.subr.mxu0 0.0
    %323 = vmatpush1.msra.mxu0 0.0
    %324 = vmatprep.subr.mxu0 0.0
    %325 = vmatpush1.msra.mxu0 0.0
    %326 = vmatprep.subr.mxu0 0.0
    %327 = vmatpush1.msra.mxu0 0.0
    %328 = vmatprep.subr.mxu0 0.0
    %329 = vmatpush1.msra.mxu0 0.0
    %330 = vmatprep.subr.mxu0 0.0
    %331 = vmatpush1.msra.mxu0 0.0
    %332 = vmatprep.subr.mxu0 0.0
    %333 = vmatpush1.msra.mxu0 0.0
    %334 = vmatprep.subr.mxu0 0.0
    %335 = vmatpush1.msra.mxu0 0.0
    %336 = vmatprep.subr.mxu0 0.0
    %337 = vmatpush1.msra.mxu0 0.0
    %338 = vmatprep.subr.mxu0 0.0
    %339 = vmatpush1.msra.mxu0 0.0
    %340 = vmatprep.subr.mxu0 0.0
    %341 = vmatpush1.msra.mxu0 0.0
    %342 = vmatprep.subr.mxu0 0.0
    %343 = vmatpush1.msra.mxu0 0.0
    %344 = vmatprep.subr.mxu0 0.0
    %345 = vmatpush1.msra.mxu0 0.0
    %346 = vmatprep.subr.mxu0 0.0
    %347 = vmatpush1.msra.mxu0 0.0
    %348 = vmatprep.subr.mxu0 0.0
    %349 = vmatpush1.msra.mxu0 0.0
    %350 = vmatprep.subr.mxu0 0.0
    %351 = vmatpush1.msra.mxu0 0.0
    %352 = vmatprep.subr.mxu0 0.0
    %353 = vmatpush1.msra.mxu0 0.0
    %354 = vmatprep.subr.mxu0 0.0
    %355 = vmatpush1.msra.mxu0 0.0
    %356 = vmatprep.subr.mxu0 0.0
    %357 = vmatpush1.msra.mxu0 0.0
    %358 = vmatprep.subr.mxu0 0.0
    %359 = vmatpush1.msra.mxu0 0.0
    %360 = vmatprep.subr.mxu0 0.0
    %361 = vmatpush1.msra.mxu0 0.0
    %362 = vmatprep.subr.mxu0 0.0
    %363 = vmatpush1.msra.mxu0 0.0
    %364 = vmatprep.subr.mxu0 0.0
    %365 = vmatpush1.msra.mxu0 0.0
    %366 = vmatprep.mubr.f32.mxu0 0.0
    %367 = vmatmul.mubr.f32.gmra.mrb[0].mxu0 %v300
    %v368 = vpop.f32.mrb[0].mxu0
    %v369 = vadd.f32 0.0, %v368
    %v370 = vpop.f32.mrb[0].mxu0
    %371 = vdwg.mxu0
    %372 = vrot.lane.b32.xlu0 %v116, 64
    %v373 = vpop.permute.xlu0 %372
    %v376 = vsel %vm122, %v295, 0
    %378 = vmatprep.subr.mxu0 0.0
    %379 = vmatpush1.msra.mxu0 %v373
    %380 = vmatprep.subr.mxu0 0.0
    %381 = vmatpush1.msra.mxu0 0.0
    %382 = vmatprep.subr.mxu0 0.0
    %383 = vmatpush1.msra.mxu0 0.0
    %384 = vmatprep.subr.mxu0 0.0
    %385 = vmatpush1.msra.mxu0 0.0
    %386 = vmatprep.subr.mxu0 0.0
    %387 = vmatpush1.msra.mxu0 0.0
    %388 = vmatprep.subr.mxu0 0.0
    %389 = vmatpush1.msra.mxu0 0.0
    %390 = vmatprep.subr.mxu0 0.0
    %391 = vmatpush1.msra.mxu0 0.0
    %392 = vmatprep.subr.mxu0 0.0
    %393 = vmatpush1.msra.mxu0 0.0
    %394 = vmatprep.subr.mxu0 0.0
    %395 = vmatpush1.msra.mxu0 0.0
    %396 = vmatprep.subr.mxu0 0.0
    %397 = vmatpush1.msra.mxu0 0.0
    %398 = vmatprep.subr.mxu0 0.0
    %399 = vmatpush1.msra.mxu0 0.0
    %400 = vmatprep.subr.mxu0 0.0
    %401 = vmatpush1.msra.mxu0 0.0
    %402 = vmatprep.subr.mxu0 0.0
    %403 = vmatpush1.msra.mxu0 0.0
    %404 = vmatprep.subr.mxu0 0.0
    %405 = vmatpush1.msra.mxu0 0.0
    %406 = vmatprep.subr.mxu0 0.0
    %407 = vmatpush1.msra.mxu0 0.0
    %408 = vmatprep.subr.mxu0 0.0
    %409 = vmatpush1.msra.mxu0 0.0
    %410 = vmatprep.subr.mxu0 0.0
    %411 = vmatpush1.msra.mxu0 0.0
    %412 = vmatprep.subr.mxu0 0.0
    %413 = vmatpush1.msra.mxu0 0.0
    %414 = vmatprep.subr.mxu0 0.0
    %415 = vmatpush1.msra.mxu0 0.0
    %416 = vmatprep.subr.mxu0 0.0
    %417 = vmatpush1.msra.mxu0 0.0
    %418 = vmatprep.subr.mxu0 0.0
    %419 = vmatpush1.msra.mxu0 0.0
    %420 = vmatprep.subr.mxu0 0.0
    %421 = vmatpush1.msra.mxu0 0.0
    %422 = vmatprep.subr.mxu0 0.0
    %423 = vmatpush1.msra.mxu0 0.0
    %424 = vmatprep.subr.mxu0 0.0
    %425 = vmatpush1.msra.mxu0 0.0
    %426 = vmatprep.subr.mxu0 0.0
    %427 = vmatpush1.msra.mxu0 0.0
    %428 = vmatprep.subr.mxu0 0.0
    %429 = vmatpush1.msra.mxu0 0.0
    %430 = vmatprep.subr.mxu0 0.0
    %431 = vmatpush1.msra.mxu0 0.0
    %432 = vmatprep.subr.mxu0 0.0
    %433 = vmatpush1.msra.mxu0 0.0
    %434 = vmatprep.subr.mxu0 0.0
    %435 = vmatpush1.msra.mxu0 0.0
    %436 = vmatprep.subr.mxu0 0.0
    %437 = vmatpush1.msra.mxu0 0.0
    %438 = vmatprep.subr.mxu0 0.0
    %439 = vmatpush1.msra.mxu0 0.0
    %440 = vmatprep.subr.mxu0 0.0
    %441 = vmatpush1.msra.mxu0 0.0
    %442 = vmatprep.mubr.f32.mxu0 0.0
    %443 = vmatmul.mubr.f32.gmra.mrb[0].mxu0 %v376
    %v444 = vpop.f32.mrb[0].mxu0
    %v445 = vadd.f32 0.0, %v444
    %v446 = vpop.f32.mrb[0].mxu0
    %447 = vdwg.mxu0
    %448 = vrot.lane.b32.xlu0 %v111, 120
    %v449 = vpop.permute.xlu0 %448
    %450 = vrot.lane.b32.xlu0 %v111, 88
    %v451 = vpop.permute.xlu0 %450
    %v452 = vsel %vm122, %v449, 0
    %v454 = vsel %vm122, %v451, 0
    %456 = vmatprep.subr.mxu0 0.0
    %457 = vmatpush1.xpose.msra.mxu0 %v454
    %458 = vmatprep.subr.mxu0 0.0
    %459 = vmatpush1.xpose.msra.mxu0 0.0
    %460 = vmatprep.subr.mxu0 0.0
    %461 = vmatpush1.xpose.msra.mxu0 0.0
    %462 = vmatprep.subr.mxu0 0.0
    %463 = vmatpush1.xpose.msra.mxu0 0.0
    %464 = vmatprep.subr.mxu0 0.0
    %465 = vmatpush1.xpose.msra.mxu0 0.0
    %466 = vmatprep.subr.mxu0 0.0
    %467 = vmatpush1.xpose.msra.mxu0 0.0
    %468 = vmatprep.subr.mxu0 0.0
    %469 = vmatpush1.xpose.msra.mxu0 0.0
    %470 = vmatprep.subr.mxu0 0.0
    %471 = vmatpush1.xpose.msra.mxu0 0.0
    %472 = vmatprep.subr.mxu0 0.0
    %473 = vmatpush1.xpose.msra.mxu0 0.0
    %474 = vmatprep.subr.mxu0 0.0
    %475 = vmatpush1.xpose.msra.mxu0 0.0
    %476 = vmatprep.subr.mxu0 0.0
    %477 = vmatpush1.xpose.msra.mxu0 0.0
    %478 = vmatprep.subr.mxu0 0.0
    %479 = vmatpush1.xpose.msra.mxu0 0.0
    %480 = vmatprep.subr.mxu0 0.0
    %481 = vmatpush1.xpose.msra.mxu0 0.0
    %482 = vmatprep.subr.mxu0 0.0
    %483 = vmatpush1.xpose.msra.mxu0 0.0
    %484 = vmatprep.subr.mxu0 0.0
    %485 = vmatpush1.xpose.msra.mxu0 0.0
    %486 = vmatprep.subr.mxu0 0.0
    %487 = vmatpush1.xpose.msra.mxu0 0.0
    %488 = vmatprep.subr.mxu0 0.0
    %489 = vmatpush1.xpose.msra.mxu0 0.0
    %490 = vmatprep.subr.mxu0 0.0
    %491 = vmatpush1.xpose.msra.mxu0 0.0
    %492 = vmatprep.subr.mxu0 0.0
    %493 = vmatpush1.xpose.msra.mxu0 0.0
    %494 = vmatprep.subr.mxu0 0.0
    %495 = vmatpush1.xpose.msra.mxu0 0.0
    %496 = vmatprep.subr.mxu0 0.0
    %497 = vmatpush1.xpose.msra.mxu0 0.0
    %498 = vmatprep.subr.mxu0 0.0
    %499 = vmatpush1.xpose.msra.mxu0 0.0
    %500 = vmatprep.subr.mxu0 0.0
    %501 = vmatpush1.xpose.msra.mxu0 0.0
    %502 = vmatprep.subr.mxu0 0.0
    %503 = vmatpush1.xpose.msra.mxu0 0.0
    %504 = vmatprep.subr.mxu0 0.0
    %505 = vmatpush1.xpose.msra.mxu0 0.0
    %506 = vmatprep.subr.mxu0 0.0
    %507 = vmatpush1.xpose.msra.mxu0 0.0
    %508 = vmatprep.subr.mxu0 0.0
    %509 = vmatpush1.xpose.msra.mxu0 0.0
    %510 = vmatprep.subr.mxu0 0.0
    %511 = vmatpush1.xpose.msra.mxu0 0.0
    %512 = vmatprep.subr.mxu0 0.0
    %513 = vmatpush1.xpose.msra.mxu0 0.0
    %514 = vmatprep.subr.mxu0 0.0
    %515 = vmatpush1.xpose.msra.mxu0 0.0
    %516 = vmatprep.subr.mxu0 0.0
    %517 = vmatpush1.xpose.msra.mxu0 0.0
    %518 = vmatprep.subr.mxu0 0.0
    %519 = vmatpush1.xpose.msra.mxu0 0.0
    %520 = vmatprep.mubr.f32.mxu0 0.0
    %521 = vmatmul.mubr.f32.gmra.mrb[0].mxu0 %v452
    %v522 = vpop.f32.mrb[0].mxu0
    %v523 = vadd.f32 0.0, %v522
    %v524 = vpop.f32.mrb[0].mxu0
    %525 = vdwg.mxu0
    %526 = vrot.lane.b32.xlu0 %v116, 120
    %v527 = vpop.permute.xlu0 %526
    %528 = vrot.lane.b32.xlu0 %v116, 88
    %v529 = vpop.permute.xlu0 %528
    %v530 = vsel %vm122, %v527, 0
    %v532 = vsel %vm122, %v529, 0
    %534 = vmatprep.subr.mxu0 0.0
    %535 = vmatpush1.xpose.msra.mxu0 %v532
    %536 = vmatprep.subr.mxu0 0.0
    %537 = vmatpush1.xpose.msra.mxu0 0.0
    %538 = vmatprep.subr.mxu0 0.0
    %539 = vmatpush1.xpose.msra.mxu0 0.0
    %540 = vmatprep.subr.mxu0 0.0
    %541 = vmatpush1.xpose.msra.mxu0 0.0
    %542 = vmatprep.subr.mxu0 0.0
    %543 = vmatpush1.xpose.msra.mxu0 0.0
    %544 = vmatprep.subr.mxu0 0.0
    %545 = vmatpush1.xpose.msra.mxu0 0.0
    %546 = vmatprep.subr.mxu0 0.0
    %547 = vmatpush1.xpose.msra.mxu0 0.0
    %548 = vmatprep.subr.mxu0 0.0
    %549 = vmatpush1.xpose.msra.mxu0 0.0
    %550 = vmatprep.subr.mxu0 0.0
    %551 = vmatpush1.xpose.msra.mxu0 0.0
    %552 = vmatprep.subr.mxu0 0.0
    %553 = vmatpush1.xpose.msra.mxu0 0.0
    %554 = vmatprep.subr.mxu0 0.0
    %555 = vmatpush1.xpose.msra.mxu0 0.0
    %556 = vmatprep.subr.mxu0 0.0
    %557 = vmatpush1.xpose.msra.mxu0 0.0
    %558 = vmatprep.subr.mxu0 0.0
    %559 = vmatpush1.xpose.msra.mxu0 0.0
    %560 = vmatprep.subr.mxu0 0.0
    %561 = vmatpush1.xpose.msra.mxu0 0.0
    %562 = vmatprep.subr.mxu0 0.0
    %563 = vmatpush1.xpose.msra.mxu0 0.0
    %564 = vmatprep.subr.mxu0 0.0
    %565 = vmatpush1.xpose.msra.mxu0 0.0
    %566 = vmatprep.subr.mxu0 0.0
    %567 = vmatpush1.xpose.msra.mxu0 0.0
    %568 = vmatprep.subr.mxu0 0.0
    %569 = vmatpush1.xpose.msra.mxu0 0.0
    %570 = vmatprep.subr.mxu0 0.0
    %571 = vmatpush1.xpose.msra.mxu0 0.0
    %572 = vmatprep.subr.mxu0 0.0
    %573 = vmatpush1.xpose.msra.mxu0 0.0
    %574 = vmatprep.subr.mxu0 0.0
    %575 = vmatpush1.xpose.msra.mxu0 0.0
    %576 = vmatprep.subr.mxu0 0.0
    %577 = vmatpush1.xpose.msra.mxu0 0.0
    %578 = vmatprep.subr.mxu0 0.0
    %579 = vmatpush1.xpose.msra.mxu0 0.0
    %580 = vmatprep.subr.mxu0 0.0
    %581 = vmatpush1.xpose.msra.mxu0 0.0
    %582 = vmatprep.subr.mxu0 0.0
    %583 = vmatpush1.xpose.msra.mxu0 0.0
    %584 = vmatprep.subr.mxu0 0.0
    %585 = vmatpush1.xpose.msra.mxu0 0.0
    %586 = vmatprep.subr.mxu0 0.0
    %587 = vmatpush1.xpose.msra.mxu0 0.0
    %588 = vmatprep.subr.mxu0 0.0
    %589 = vmatpush1.xpose.msra.mxu0 0.0
    %590 = vmatprep.subr.mxu0 0.0
    %591 = vmatpush1.xpose.msra.mxu0 0.0
    %592 = vmatprep.subr.mxu0 0.0
    %593 = vmatpush1.xpose.msra.mxu0 0.0
    %594 = vmatprep.subr.mxu0 0.0
    %595 = vmatpush1.xpose.msra.mxu0 0.0
    %596 = vmatprep.subr.mxu0 0.0
    %597 = vmatpush1.xpose.msra.mxu0 0.0
    %598 = vmatprep.mubr.f32.mxu0 0.0
    %599 = vmatmul.mubr.f32.gmra.mrb[0].mxu0 %v530
    %v600 = vpop.f32.mrb[0].mxu0
    %v601 = vadd.f32 0.0, %v600
    %v602 = vpop.f32.mrb[0].mxu0
    %603 = vdwg.mxu0
    %v604 = vsel %vm122, %v523, -inf
    %605 = vmax.xlane.f32.xlu0 %v604
    %v606 = vpop.xlane.xlu0 %605
    %v607 = vsel %vm122, %v601, -inf
    %608 = vmax.xlane.f32.xlu0 %v607
    %v609 = vpop.xlane.xlu0 %608
    %v610 = vsub.f32 %v523, %v606
    %v611 = vsub.f32 %v601, %v609
    %v612 = vmul.f32 %v610, 1.442695
    %v613 = vpow.pop %v612
    %v614 = vmul.f32 %v611, 1.442695
    %v615 = vpow.pop %v614
    %v616 = vsel %vm122, %v613, 0.0
    %617 = vadd.xlane.f32.xlu0 %v616
    %v618 = vpop.xlane.xlu0 %617
    %v619 = vsel %vm122, %v615, 0.0
    %620 = vadd.xlane.f32.xlu0 %v619
    %v621 = vpop.xlane.xlu0 %620
    %v622 = vrcp.pop %v618
    %v623 = vrcp.pop %v621
    %v624 = vmul.f32 %v613, %v622
    %v625 = vmul.f32 %v615, %v623
    %626 = vrot.lane.b32.xlu0 %v111, 56
    %v627 = vpop.permute.xlu0 %626
    %v630 = vsel %vm122, %v624, 0
    %632 = vmatprep.subr.mxu0 0.0
    %633 = vmatpush1.msra.mxu0 %v627
    %634 = vmatprep.subr.mxu0 0.0
    %635 = vmatpush1.msra.mxu0 0.0
    %636 = vmatprep.subr.mxu0 0.0
    %637 = vmatpush1.msra.mxu0 0.0
    %638 = vmatprep.subr.mxu0 0.0
    %639 = vmatpush1.msra.mxu0 0.0
    %640 = vmatprep.subr.mxu0 0.0
    %641 = vmatpush1.msra.mxu0 0.0
    %642 = vmatprep.subr.mxu0 0.0
    %643 = vmatpush1.msra.mxu0 0.0
    %644 = vmatprep.subr.mxu0 0.0
    %645 = vmatpush1.msra.mxu0 0.0
    %646 = vmatprep.subr.mxu0 0.0
    %647 = vmatpush1.msra.mxu0 0.0
    %648 = vmatprep.subr.mxu0 0.0
    %649 = vmatpush1.msra.mxu0 0.0
    %650 = vmatprep.subr.mxu0 0.0
    %651 = vmatpush1.msra.mxu0 0.0
    %652 = vmatprep.subr.mxu0 0.0
    %653 = vmatpush1.msra.mxu0 0.0
    %654 = vmatprep.subr.mxu0 0.0
    %655 = vmatpush1.msra.mxu0 0.0
    %656 = vmatprep.subr.mxu0 0.0
    %657 = vmatpush1.msra.mxu0 0.0
    %658 = vmatprep.subr.mxu0 0.0
    %659 = vmatpush1.msra.mxu0 0.0
    %660 = vmatprep.subr.mxu0 0.0
    %661 = vmatpush1.msra.mxu0 0.0
    %662 = vmatprep.subr.mxu0 0.0
    %663 = vmatpush1.msra.mxu0 0.0
    %664 = vmatprep.subr.mxu0 0.0
    %665 = vmatpush1.msra.mxu0 0.0
    %666 = vmatprep.subr.mxu0 0.0
    %667 = vmatpush1.msra.mxu0 0.0
    %668 = vmatprep.subr.mxu0 0.0
    %669 = vmatpush1.msra.mxu0 0.0
    %670 = vmatprep.subr.mxu0 0.0
    %671 = vmatpush1.msra.mxu0 0.0
    %672 = vmatprep.subr.mxu0 0.0
    %673 = vmatpush1.msra.mxu0 0.0
    %674 = vmatprep.subr.mxu0 0.0
    %675 = vmatpush1.msra.mxu0 0.0
    %676 = vmatprep.subr.mxu0 0.0
    %677 = vmatpush1.msra.mxu0 0.0
    %678 = vmatprep.subr.mxu0 0.0
    %679 = vmatpush1.msra.mxu0 0.0
    %680 = vmatprep.subr.mxu0 0.0
    %681 = vmatpush1.msra.mxu0 0.0
    %682 = vmatprep.subr.mxu0 0.0
    %683 = vmatpush1.msra.mxu0 0.0
    %684 = vmatprep.subr.mxu0 0.0
    %685 = vmatpush1.msra.mxu0 0.0
    %686 = vmatprep.subr.mxu0 0.0
    %687 = vmatpush1.msra.mxu0 0.0
    %688 = vmatprep.subr.mxu0 0.0
    %689 = vmatpush1.msra.mxu0 0.0
    %690 = vmatprep.subr.mxu0 0.0
    %691 = vmatpush1.msra.mxu0 0.0
    %692 = vmatprep.subr.mxu0 0.0
    %693 = vmatpush1.msra.mxu0 0.0
    %694 = vmatprep.subr.mxu0 0.0
    %695 = vmatpush1.msra.mxu0 0.0
    %696 = vmatprep.mubr.f32.mxu0 0.0
    %697 = vmatmul.mubr.f32.gmra.mrb[0].mxu0 %v630
    %v698 = vpop.f32.mrb[0].mxu0
    %v699 = vadd.f32 0.0, %v698
    %v700 = vpop.f32.mrb[0].mxu0
    %701 = vdwg.mxu0
    %702 = vrot.lane.b32.xlu0 %v116, 56
    %v703 = vpop.permute.xlu0 %702
    %v706 = vsel %vm122, %v625, 0
    %708 = vmatprep.subr.mxu0 0.0
    %709 = vmatpush1.msra.mxu0 %v703
    %710 = vmatprep.subr.mxu0 0.0
    %711 = vmatpush1.msra.mxu0 0.0
    %712 = vmatprep.subr.mxu0 0.0
    %713 = vmatpush1.msra.mxu0 0.0
    %714 = vmatprep.subr.mxu0 0.0
    %715 = vmatpush1.msra.mxu0 0.0
    %716 = vmatprep.subr.mxu0 0.0
    %717 = vmatpush1.msra.mxu0 0.0
    %718 = vmatprep.subr.mxu0 0.0
    %719 = vmatpush1.msra.mxu0 0.0
    %720 = vmatprep.subr.mxu0 0.0
    %721 = vmatpush1.msra.mxu0 0.0
    %722 = vmatprep.subr.mxu0 0.0
    %723 = vmatpush1.msra.mxu0 0.0
    %724 = vmatprep.subr.mxu0 0.0
    %725 = vmatpush1.msra.mxu0 0.0
    %726 = vmatprep.subr.mxu0 0.0
    %727 = vmatpush1.msra.mxu0 0.0
    %728 = vmatprep.subr.mxu0 0.0
    %729 = vmatpush1.msra.mxu0 0.0
    %730 = vmatprep.subr.mxu0 0.0
    %731 = vmatpush1.msra.mxu0 0.0
    %732 = vmatprep.subr.mxu0 0.0
    %733 = vmatpush1.msra.mxu0 0.0
    %734 = vmatprep.subr.mxu0 0.0
    %735 = vmatpush1.msra.mxu0 0.0
    %736 = vmatprep.subr.mxu0 0.0
    %737 = vmatpush1.msra.mxu0 0.0
    %738 = vmatprep.subr.mxu0 0.0
    %739 = vmatpush1.msra.mxu0 0.0
    %740 = vmatprep.subr.mxu0 0.0
    %741 = vmatpush1.msra.mxu0 0.0
    %742 = vmatprep.subr.mxu0 0.0
    %743 = vmatpush1.msra.mxu0 0.0
    %744 = vmatprep.subr.mxu0 0.0
    %745 = vmatpush1.msra.mxu0 0.0
    %746 = vmatprep.subr.mxu0 0.0
    %747 = vmatpush1.msra.mxu0 0.0
    %748 = vmatprep.subr.mxu0 0.0
    %749 = vmatpush1.msra.mxu0 0.0
    %750 = vmatprep.subr.mxu0 0.0
    %751 = vmatpush1.msra.mxu0 0.0
    %752 = vmatprep.subr.mxu0 0.0
    %753 = vmatpush1.msra.mxu0 0.0
    %754 = vmatprep.subr.mxu0 0.0
    %755 = vmatpush1.msra.mxu0 0.0
    %756 = vmatprep.subr.mxu0 0.0
    %757 = vmatpush1.msra.mxu0 0.0
    %758 = vmatprep.subr.mxu0 0.0
    %759 = vmatpush1.msra.mxu0 0.0
    %760 = vmatprep.subr.mxu0 0.0
    %761 = vmatpush1.msra.mxu0 0.0
    %762 = vmatprep.subr.mxu0 0.0
    %763 = vmatpush1.msra.mxu0 0.0
    %764 = vmatprep.subr.mxu0 0.0
    %765 = vmatpush1.msra.mxu0 0.0
    %766 = vmatprep.subr.mxu0 0.0
    %767 = vmatpush1.msra.mxu0 0.0
    %768 = vmatprep.subr.mxu0 0.0
    %769 = vmatpush1.msra.mxu0 0.0
    %770 = vmatprep.subr.mxu0 0.0
    %771 = vmatpush1.msra.mxu0 0.0
    %772 = vmatprep.mubr.f32.mxu0 0.0
    %773 = vmatmul.mubr.f32.gmra.mrb[0].mxu0 %v706
    %v774 = vpop.f32.mrb[0].mxu0
    %v775 = vadd.f32 0.0, %v774
    %v776 = vpop.f32.mrb[0].mxu0
    %777 = vdwg.mxu0
    %778 = vrot.lane.b32.xlu0 %v111, 112
    %v779 = vpop.permute.xlu0 %778
    %780 = vrot.lane.b32.xlu0 %v111, 80
    %v781 = vpop.permute.xlu0 %780
    %v782 = vsel %vm122, %v779, 0
    %v784 = vsel %vm122, %v781, 0
    %786 = vmatprep.subr.mxu0 0.0
    %787 = vmatpush1.xpose.msra.mxu0 %v784
    %788 = vmatprep.subr.mxu0 0.0
    %789 = vmatpush1.xpose.msra.mxu0 0.0
    %790 = vmatprep.subr.mxu0 0.0
    %791 = vmatpush1.xpose.msra.mxu0 0.0
    %792 = vmatprep.subr.mxu0 0.0
    %793 = vmatpush1.xpose.msra.mxu0 0.0
    %794 = vmatprep.subr.mxu0 0.0
    %795 = vmatpush1.xpose.msra.mxu0 0.0
    %796 = vmatprep.subr.mxu0 0.0
    %797 = vmatpush1.xpose.msra.mxu0 0.0
    %798 = vmatprep.subr.mxu0 0.0
    %799 = vmatpush1.xpose.msra.mxu0 0.0
    %800 = vmatprep.subr.mxu0 0.0
    %801 = vmatpush1.xpose.msra.mxu0 0.0
    %802 = vmatprep.subr.mxu0 0.0
    %803 = vmatpush1.xpose.msra.mxu0 0.0
    %804 = vmatprep.subr.mxu0 0.0
    %805 = vmatpush1.xpose.msra.mxu0 0.0
    %806 = vmatprep.subr.mxu0 0.0
    %807 = vmatpush1.xpose.msra.mxu0 0.0
    %808 = vmatprep.subr.mxu0 0.0
    %809 = vmatpush1.xpose.msra.mxu0 0.0
    %810 = vmatprep.subr.mxu0 0.0
    %811 = vmatpush1.xpose.msra.mxu0 0.0
    %812 = vmatprep.subr.mxu0 0.0
    %813 = vmatpush1.xpose.msra.mxu0 0.0
    %814 = vmatprep.subr.mxu0 0.0
    %815 = vmatpush1.xpose.msra.mxu0 0.0
    %816 = vmatprep.subr.mxu0 0.0
    %817 = vmatpush1.xpose.msra.mxu0 0.0
    %818 = vmatprep.subr.mxu0 0.0
    %819 = vmatpush1.xpose.msra.mxu0 0.0
    %820 = vmatprep.subr.mxu0 0.0
    %821 = vmatpush1.xpose.msra.mxu0 0.0
    %822 = vmatprep.subr.mxu0 0.0
    %823 = vmatpush1.xpose.msra.mxu0 0.0
    %824 = vmatprep.subr.mxu0 0.0
    %825 = vmatpush1.xpose.msra.mxu0 0.0
    %826 = vmatprep.subr.mxu0 0.0
    %827 = vmatpush1.xpose.msra.mxu0 0.0
    %828 = vmatprep.subr.mxu0 0.0
    %829 = vmatpush1.xpose.msra.mxu0 0.0
    %830 = vmatprep.subr.mxu0 0.0
    %831 = vmatpush1.xpose.msra.mxu0 0.0
    %832 = vmatprep.subr.mxu0 0.0
    %833 = vmatpush1.xpose.msra.mxu0 0.0
    %834 = vmatprep.subr.mxu0 0.0
    %835 = vmatpush1.xpose.msra.mxu0 0.0
    %836 = vmatprep.subr.mxu0 0.0
    %837 = vmatpush1.xpose.msra.mxu0 0.0
    %838 = vmatprep.subr.mxu0 0.0
    %839 = vmatpush1.xpose.msra.mxu0 0.0
    %840 = vmatprep.subr.mxu0 0.0
    %841 = vmatpush1.xpose.msra.mxu0 0.0
    %842 = vmatprep.subr.mxu0 0.0
    %843 = vmatpush1.xpose.msra.mxu0 0.0
    %844 = vmatprep.subr.mxu0 0.0
    %845 = vmatpush1.xpose.msra.mxu0 0.0
    %846 = vmatprep.subr.mxu0 0.0
    %847 = vmatpush1.xpose.msra.mxu0 0.0
    %848 = vmatprep.subr.mxu0 0.0
    %849 = vmatpush1.xpose.msra.mxu0 0.0
    %850 = vmatprep.mubr.f32.mxu0 0.0
    %851 = vmatmul.mubr.f32.gmra.mrb[0].mxu0 %v782
    %v852 = vpop.f32.mrb[0].mxu0
    %v853 = vadd.f32 0.0, %v852
    %v854 = vpop.f32.mrb[0].mxu0
    %855 = vdwg.mxu0
    %856 = vrot.lane.b32.xlu0 %v116, 112
    %v857 = vpop.permute.xlu0 %856
    %858 = vrot.lane.b32.xlu0 %v116, 80
    %v859 = vpop.permute.xlu0 %858
    %v860 = vsel %vm122, %v857, 0
    %v862 = vsel %vm122, %v859, 0
    %864 = vmatprep.subr.mxu0 0.0
    %865 = vmatpush1.xpose.msra.mxu0 %v862
    %866 = vmatprep.subr.mxu0 0.0
    %867 = vmatpush1.xpose.msra.mxu0 0.0
    %868 = vmatprep.subr.mxu0 0.0
    %869 = vmatpush1.xpose.msra.mxu0 0.0
    %870 = vmatprep.subr.mxu0 0.0
    %871 = vmatpush1.xpose.msra.mxu0 0.0
    %872 = vmatprep.subr.mxu0 0.0
    %873 = vmatpush1.xpose.msra.mxu0 0.0
    %874 = vmatprep.subr.mxu0 0.0
    %875 = vmatpush1.xpose.msra.mxu0 0.0
    %876 = vmatprep.subr.mxu0 0.0
    %877 = vmatpush1.xpose.msra.mxu0 0.0
    %878 = vmatprep.subr.mxu0 0.0
    %879 = vmatpush1.xpose.msra.mxu0 0.0
    %880 = vmatprep.subr.mxu0 0.0
    %881 = vmatpush1.xpose.msra.mxu0 0.0
    %882 = vmatprep.subr.mxu0 0.0
    %883 = vmatpush1.xpose.msra.mxu0 0.0
    %884 = vmatprep.subr.mxu0 0.0
    %885 = vmatpush1.xpose.msra.mxu0 0.0
    %886 = vmatprep.subr.mxu0 0.0
    %887 = vmatpush1.xpose.msra.mxu0 0.0
    %888 = vmatprep.subr.mxu0 0.0
    %889 = vmatpush1.xpose.msra.mxu0 0.0
    %890 = vmatprep.subr.mxu0 0.0
    %891 = vmatpush1.xpose.msra.mxu0 0.0
    %892 = vmatprep.subr.mxu0 0.0
    %893 = vmatpush1.xpose.msra.mxu0 0.0
    %894 = vmatprep.subr.mxu0 0.0
    %895 = vmatpush1.xpose.msra.mxu0 0.0
    %896 = vmatprep.subr.mxu0 0.0
    %897 = vmatpush1.xpose.msra.mxu0 0.0
    %898 = vmatprep.subr.mxu0 0.0
    %899 = vmatpush1.xpose.msra.mxu0 0.0
    %900 = vmatprep.subr.mxu0 0.0
    %901 = vmatpush1.xpose.msra.mxu0 0.0
    %902 = vmatprep.subr.mxu0 0.0
    %903 = vmatpush1.xpose.msra.mxu0 0.0
    %904 = vmatprep.subr.mxu0 0.0
    %905 = vmatpush1.xpose.msra.mxu0 0.0
    %906 = vmatprep.subr.mxu0 0.0
    %907 = vmatpush1.xpose.msra.mxu0 0.0
    %908 = vmatprep.subr.mxu0 0.0
    %909 = vmatpush1.xpose.msra.mxu0 0.0
    %910 = vmatprep.subr.mxu0 0.0
    %911 = vmatpush1.xpose.msra.mxu0 0.0
    %912 = vmatprep.subr.mxu0 0.0
    %913 = vmatpush1.xpose.msra.mxu0 0.0
    %914 = vmatprep.subr.mxu0 0.0
    %915 = vmatpush1.xpose.msra.mxu0 0.0
    %916 = vmatprep.subr.mxu0 0.0
    %917 = vmatpush1.xpose.msra.mxu0 0.0
    %918 = vmatprep.subr.mxu0 0.0
    %919 = vmatpush1.xpose.msra.mxu0 0.0
    %920 = vmatprep.subr.mxu0 0.0
    %921 = vmatpush1.xpose.msra.mxu0 0.0
    %922 = vmatprep.subr.mxu0 0.0
    %923 = vmatpush1.xpose.msra.mxu0 0.0
    %924 = vmatprep.subr.mxu0 0.0
    %925 = vmatpush1.xpose.msra.mxu0 0.0
    %926 = vmatprep.subr.mxu0 0.0
    %927 = vmatpush1.xpose.msra.mxu0 0.0
    %928 = vmatprep.mubr.f32.mxu0 0.0
    %929 = vmatmul.mubr.f32.gmra.mrb[0].mxu0 %v860
    %v930 = vpop.f32.mrb[0].mxu0
    %v931 = vadd.f32 0.0, %v930
    %v932 = vpop.f32.mrb[0].mxu0
    %933 = vdwg.mxu0
    %v934 = vsel %vm122, %v853, -inf
    %935 = vmax.xlane.f32.xlu0 %v934
    %v936 = vpop.xlane.xlu0 %935
    %v937 = vsel %vm122, %v931, -inf
    %938 = vmax.xlane.f32.xlu0 %v937
    %v939 = vpop.xlane.xlu0 %938
    %v940 = vsub.f32 %v853, %v936
    %v941 = vsub.f32 %v931, %v939
    %v942 = vmul.f32 %v940, 1.442695
    %v943 = vpow.pop %v942
    %v944 = vmul.f32 %v941, 1.442695
    %v945 = vpow.pop %v944
    %v946 = vsel %vm122, %v943, 0.0
    %947 = vadd.xlane.f32.xlu0 %v946
    %v948 = vpop.xlane.xlu0 %947
    %v949 = vsel %vm122, %v945, 0.0
    %950 = vadd.xlane.f32.xlu0 %v949
    %v951 = vpop.xlane.xlu0 %950
    %v952 = vrcp.pop %v948
    %v953 = vrcp.pop %v951
    %v954 = vmul.f32 %v943, %v952
    %v955 = vmul.f32 %v945, %v953
    %956 = vrot.lane.b32.xlu0 %v111, 48
    %v957 = vpop.permute.xlu0 %956
    %v960 = vsel %vm122, %v954, 0
    %962 = vmatprep.subr.mxu0 0.0
    %963 = vmatpush1.msra.mxu0 %v957
    %964 = vmatprep.subr.mxu0 0.0
    %965 = vmatpush1.msra.mxu0 0.0
    %966 = vmatprep.subr.mxu0 0.0
    %967 = vmatpush1.msra.mxu0 0.0
    %968 = vmatprep.subr.mxu0 0.0
    %969 = vmatpush1.msra.mxu0 0.0
    %970 = vmatprep.subr.mxu0 0.0
    %971 = vmatpush1.msra.mxu0 0.0
    %972 = vmatprep.subr.mxu0 0.0
    %973 = vmatpush1.msra.mxu0 0.0
    %974 = vmatprep.subr.mxu0 0.0
    %975 = vmatpush1.msra.mxu0 0.0
    %976 = vmatprep.subr.mxu0 0.0
    %977 = vmatpush1.msra.mxu0 0.0
    %978 = vmatprep.subr.mxu0 0.0
    %979 = vmatpush1.msra.mxu0 0.0
    %980 = vmatprep.subr.mxu0 0.0
    %981 = vmatpush1.msra.mxu0 0.0
    %982 = vmatprep.subr.mxu0 0.0
    %983 = vmatpush1.msra.mxu0 0.0
    %984 = vmatprep.subr.mxu0 0.0
    %985 = vmatpush1.msra.mxu0 0.0
    %986 = vmatprep.subr.mxu0 0.0
    %987 = vmatpush1.msra.mxu0 0.0
    %988 = vmatprep.subr.mxu0 0.0
    %989 = vmatpush1.msra.mxu0 0.0
    %990 = vmatprep.subr.mxu0 0.0
    %991 = vmatpush1.msra.mxu0 0.0
    %992 = vmatprep.subr.mxu0 0.0
    %993 = vmatpush1.msra.mxu0 0.0
    %994 = vmatprep.subr.mxu0 0.0
    %995 = vmatpush1.msra.mxu0 0.0
    %996 = vmatprep.subr.mxu0 0.0
    %997 = vmatpush1.msra.mxu0 0.0
    %998 = vmatprep.subr.mxu0 0.0
    %999 = vmatpush1.msra.mxu0 0.0
    %1000 = vmatprep.subr.mxu0 0.0
    %1001 = vmatpush1.msra.mxu0 0.0
    %1002 = vmatprep.subr.mxu0 0.0
    %1003 = vmatpush1.msra.mxu0 0.0
    %1004 = vmatprep.subr.mxu0 0.0
    %1005 = vmatpush1.msra.mxu0 0.0
    %1006 = vmatprep.subr.mxu0 0.0
    %1007 = vmatpush1.msra.mxu0 0.0
    %1008 = vmatprep.subr.mxu0 0.0
    %1009 = vmatpush1.msra.mxu0 0.0
    %1010 = vmatprep.subr.mxu0 0.0
    %1011 = vmatpush1.msra.mxu0 0.0
    %1012 = vmatprep.subr.mxu0 0.0
    %1013 = vmatpush1.msra.mxu0 0.0
    %1014 = vmatprep.subr.mxu0 0.0
    %1015 = vmatpush1.msra.mxu0 0.0
    %1016 = vmatprep.subr.mxu0 0.0
    %1017 = vmatpush1.msra.mxu0 0.0
    %1018 = vmatprep.subr.mxu0 0.0
    %1019 = vmatpush1.msra.mxu0 0.0
    %1020 = vmatprep.subr.mxu0 0.0
    %1021 = vmatpush1.msra.mxu0 0.0
    %1022 = vmatprep.subr.mxu0 0.0
    %1023 = vmatpush1.msra.mxu0 0.0
    %1024 = vmatprep.subr.mxu0 0.0
    %1025 = vmatpush1.msra.mxu0 0.0
    %1026 = vmatprep.mubr.f32.mxu0 0.0
    %1027 = vmatmul.mubr.f32.gmra.mrb[0].mxu0 %v960
    %v1028 = vpop.f32.mrb[0].mxu0
    %v1029 = vadd.f32 0.0, %v1028
    %v1030 = vpop.f32.mrb[0].mxu0
    %1031 = vdwg.mxu0
    %1032 = vrot.lane.b32.xlu0 %v116, 48
    %v1033 = vpop.permute.xlu0 %1032
    %v1036 = vsel %vm122, %v955, 0
    %1038 = vmatprep.subr.mxu0 0.0
    %1039 = vmatpush1.msra.mxu0 %v1033
    %1040 = vmatprep.subr.mxu0 0.0
    %1041 = vmatpush1.msra.mxu0 0.0
    %1042 = vmatprep.subr.mxu0 0.0
    %1043 = vmatpush1.msra.mxu0 0.0
    %1044 = vmatprep.subr.mxu0 0.0
    %1045 = vmatpush1.msra.mxu0 0.0
    %1046 = vmatprep.subr.mxu0 0.0
    %1047 = vmatpush1.msra.mxu0 0.0
    %1048 = vmatprep.subr.mxu0 0.0
    %1049 = vmatpush1.msra.mxu0 0.0
    %1050 = vmatprep.subr.mxu0 0.0
    %1051 = vmatpush1.msra.mxu0 0.0
    %1052 = vmatprep.subr.mxu0 0.0
    %1053 = vmatpush1.msra.mxu0 0.0
    %1054 = vmatprep.subr.mxu0 0.0
    %1055 = vmatpush1.msra.mxu0 0.0
    %1056 = vmatprep.subr.mxu0 0.0
    %1057 = vmatpush1.msra.mxu0 0.0
    %1058 = vmatprep.subr.mxu0 0.0
    %1059 = vmatpush1.msra.mxu0 0.0
    %1060 = vmatprep.subr.mxu0 0.0
    %1061 = vmatpush1.msra.mxu0 0.0
    %1062 = vmatprep.subr.mxu0 0.0
    %1063 = vmatpush1.msra.mxu0 0.0
    %1064 = vmatprep.subr.mxu0 0.0
    %1065 = vmatpush1.msra.mxu0 0.0
    %1066 = vmatprep.subr.mxu0 0.0
    %1067 = vmatpush1.msra.mxu0 0.0
    %1068 = vmatprep.subr.mxu0 0.0
    %1069 = vmatpush1.msra.mxu0 0.0
    %1070 = vmatprep.subr.mxu0 0.0
    %1071 = vmatpush1.msra.mxu0 0.0
    %1072 = vmatprep.subr.mxu0 0.0
    %1073 = vmatpush1.msra.mxu0 0.0
    %1074 = vmatprep.subr.mxu0 0.0
    %1075 = vmatpush1.msra.mxu0 0.0
    %1076 = vmatprep.subr.mxu0 0.0
    %1077 = vmatpush1.msra.mxu0 0.0
    %1078 = vmatprep.subr.mxu0 0.0
    %1079 = vmatpush1.msra.mxu0 0.0
    %1080 = vmatprep.subr.mxu0 0.0
    %1081 = vmatpush1.msra.mxu0 0.0
    %1082 = vmatprep.subr.mxu0 0.0
    %1083 = vmatpush1.msra.mxu0 0.0
    %1084 = vmatprep.subr.mxu0 0.0
    %1085 = vmatpush1.msra.mxu0 0.0
    %1086 = vmatprep.subr.mxu0 0.0
    %1087 = vmatpush1.msra.mxu0 0.0
    %1088 = vmatprep.subr.mxu0 0.0
    %1089 = vmatpush1.msra.mxu0 0.0
    %1090 = vmatprep.subr.mxu0 0.0
    %1091 = vmatpush1.msra.mxu0 0.0
    %1092 = vmatprep.subr.mxu0 0.0
    %1093 = vmatpush1.msra.mxu0 0.0
    %1094 = vmatprep.subr.mxu0 0.0
    %1095 = vmatpush1.msra.mxu0 0.0
    %1096 = vmatprep.subr.mxu0 0.0
    %1097 = vmatpush1.msra.mxu0 0.0
    %1098 = vmatprep.subr.mxu0 0.0
    %1099 = vmatpush1.msra.mxu0 0.0
    %1100 = vmatprep.subr.mxu0 0.0
    %1101 = vmatpush1.msra.mxu0 0.0
    %1102 = vmatprep.mubr.f32.mxu0 0.0
    %1103 = vmatmul.mubr.f32.gmra.mrb[0].mxu0 %v1036
    %v1104 = vpop.f32.mrb[0].mxu0
    %v1105 = vadd.f32 0.0, %v1104
    %v1106 = vpop.f32.mrb[0].mxu0
    %1107 = vdwg.mxu0
    %1108 = vrot.lane.b32.xlu0 %v111, 104
    %v1109 = vpop.permute.xlu0 %1108
    %1110 = vrot.lane.b32.xlu0 %v111, 72
    %v1111 = vpop.permute.xlu0 %1110
    %v1112 = vsel %vm122, %v1109, 0
    %v1114 = vsel %vm122, %v1111, 0
    %1116 = vmatprep.subr.mxu0 0.0
    %1117 = vmatpush1.xpose.msra.mxu0 %v1114
    %1118 = vmatprep.subr.mxu0 0.0
    %1119 = vmatpush1.xpose.msra.mxu0 0.0
    %1120 = vmatprep.subr.mxu0 0.0
    %1121 = vmatpush1.xpose.msra.mxu0 0.0
    %1122 = vmatprep.subr.mxu0 0.0
    %1123 = vmatpush1.xpose.msra.mxu0 0.0
    %1124 = vmatprep.subr.mxu0 0.0
    %1125 = vmatpush1.xpose.msra.mxu0 0.0
    %1126 = vmatprep.subr.mxu0 0.0
    %1127 = vmatpush1.xpose.msra.mxu0 0.0
    %1128 = vmatprep.subr.mxu0 0.0
    %1129 = vmatpush1.xpose.msra.mxu0 0.0
    %1130 = vmatprep.subr.mxu0 0.0
    %1131 = vmatpush1.xpose.msra.mxu0 0.0
    %1132 = vmatprep.subr.mxu0 0.0
    %1133 = vmatpush1.xpose.msra.mxu0 0.0
    %1134 = vmatprep.subr.mxu0 0.0
    %1135 = vmatpush1.xpose.msra.mxu0 0.0
    %1136 = vmatprep.subr.mxu0 0.0
    %1137 = vmatpush1.xpose.msra.mxu0 0.0
    %1138 = vmatprep.subr.mxu0 0.0
    %1139 = vmatpush1.xpose.msra.mxu0 0.0
    %1140 = vmatprep.subr.mxu0 0.0
    %1141 = vmatpush1.xpose.msra.mxu0 0.0
    %1142 = vmatprep.subr.mxu0 0.0
    %1143 = vmatpush1.xpose.msra.mxu0 0.0
    %1144 = vmatprep.subr.mxu0 0.0
    %1145 = vmatpush1.xpose.msra.mxu0 0.0
    %1146 = vmatprep.subr.mxu0 0.0
    %1147 = vmatpush1.xpose.msra.mxu0 0.0
    %1148 = vmatprep.subr.mxu0 0.0
    %1149 = vmatpush1.xpose.msra.mxu0 0.0
    %1150 = vmatprep.subr.mxu0 0.0
    %1151 = vmatpush1.xpose.msra.mxu0 0.0
    %1152 = vmatprep.subr.mxu0 0.0
    %1153 = vmatpush1.xpose.msra.mxu0 0.0
    %1154 = vmatprep.subr.mxu0 0.0
    %1155 = vmatpush1.xpose.msra.mxu0 0.0
    %1156 = vmatprep.subr.mxu0 0.0
    %1157 = vmatpush1.xpose.msra.mxu0 0.0
    %1158 = vmatprep.subr.mxu0 0.0
    %1159 = vmatpush1.xpose.msra.mxu0 0.0
    %1160 = vmatprep.subr.mxu0 0.0
    %1161 = vmatpush1.xpose.msra.mxu0 0.0
    %1162 = vmatprep.subr.mxu0 0.0
    %1163 = vmatpush1.xpose.msra.mxu0 0.0
    %1164 = vmatprep.subr.mxu0 0.0
    %1165 = vmatpush1.xpose.msra.mxu0 0.0
    %1166 = vmatprep.subr.mxu0 0.0
    %1167 = vmatpush1.xpose.msra.mxu0 0.0
    %1168 = vmatprep.subr.mxu0 0.0
    %1169 = vmatpush1.xpose.msra.mxu0 0.0
    %1170 = vmatprep.subr.mxu0 0.0
    %1171 = vmatpush1.xpose.msra.mxu0 0.0
    %1172 = vmatprep.subr.mxu0 0.0
    %1173 = vmatpush1.xpose.msra.mxu0 0.0
    %1174 = vmatprep.subr.mxu0 0.0
    %1175 = vmatpush1.xpose.msra.mxu0 0.0
    %1176 = vmatprep.subr.mxu0 0.0
    %1177 = vmatpush1.xpose.msra.mxu0 0.0
    %1178 = vmatprep.subr.mxu0 0.0
    %1179 = vmatpush1.xpose.msra.mxu0 0.0
    %1180 = vmatprep.mubr.f32.mxu0 0.0
    %1181 = vmatmul.mubr.f32.gmra.mrb[0].mxu0 %v1112
    %v1182 = vpop.f32.mrb[0].mxu0
    %v1183 = vadd.f32 0.0, %v1182
    %v1184 = vpop.f32.mrb[0].mxu0
    %1185 = vdwg.mxu0
    %1186 = vrot.lane.b32.xlu0 %v116, 104
    %v1187 = vpop.permute.xlu0 %1186
    %1188 = vrot.lane.b32.xlu0 %v116, 72
    %v1189 = vpop.permute.xlu0 %1188
    %v1190 = vsel %vm122, %v1187, 0
    %v1192 = vsel %vm122, %v1189, 0
    %1194 = vmatprep.subr.mxu0 0.0
    %1195 = vmatpush1.xpose.msra.mxu0 %v1192
    %1196 = vmatprep.subr.mxu0 0.0
    %1197 = vmatpush1.xpose.msra.mxu0 0.0
    %1198 = vmatprep.subr.mxu0 0.0
    %1199 = vmatpush1.xpose.msra.mxu0 0.0
    %1200 = vmatprep.subr.mxu0 0.0
    %1201 = vmatpush1.xpose.msra.mxu0 0.0
    %1202 = vmatprep.subr.mxu0 0.0
    %1203 = vmatpush1.xpose.msra.mxu0 0.0
    %1204 = vmatprep.subr.mxu0 0.0
    %1205 = vmatpush1.xpose.msra.mxu0 0.0
    %1206 = vmatprep.subr.mxu0 0.0
    %1207 = vmatpush1.xpose.msra.mxu0 0.0
    %1208 = vmatprep.subr.mxu0 0.0
    %1209 = vmatpush1.xpose.msra.mxu0 0.0
    %1210 = vmatprep.subr.mxu0 0.0
    %1211 = vmatpush1.xpose.msra.mxu0 0.0
    %1212 = vmatprep.subr.mxu0 0.0
    %1213 = vmatpush1.xpose.msra.mxu0 0.0
    %1214 = vmatprep.subr.mxu0 0.0
    %1215 = vmatpush1.xpose.msra.mxu0 0.0
    %1216 = vmatprep.subr.mxu0 0.0
    %1217 = vmatpush1.xpose.msra.mxu0 0.0
    %1218 = vmatprep.subr.mxu0 0.0
    %1219 = vmatpush1.xpose.msra.mxu0 0.0
    %1220 = vmatprep.subr.mxu0 0.0
    %1221 = vmatpush1.xpose.msra.mxu0 0.0
    %1222 = vmatprep.subr.mxu0 0.0
    %1223 = vmatpush1.xpose.msra.mxu0 0.0
    %1224 = vmatprep.subr.mxu0 0.0
    %1225 = vmatpush1.xpose.msra.mxu0 0.0
    %1226 = vmatprep.subr.mxu0 0.0
    %1227 = vmatpush1.xpose.msra.mxu0 0.0
    %1228 = vmatprep.subr.mxu0 0.0
    %1229 = vmatpush1.xpose.msra.mxu0 0.0
    %1230 = vmatprep.subr.mxu0 0.0
    %1231 = vmatpush1.xpose.msra.mxu0 0.0
    %1232 = vmatprep.subr.mxu0 0.0
    %1233 = vmatpush1.xpose.msra.mxu0 0.0
    %1234 = vmatprep.subr.mxu0 0.0
    %1235 = vmatpush1.xpose.msra.mxu0 0.0
    %1236 = vmatprep.subr.mxu0 0.0
    %1237 = vmatpush1.xpose.msra.mxu0 0.0
    %1238 = vmatprep.subr.mxu0 0.0
    %1239 = vmatpush1.xpose.msra.mxu0 0.0
    %1240 = vmatprep.subr.mxu0 0.0
    %1241 = vmatpush1.xpose.msra.mxu0 0.0
    %1242 = vmatprep.subr.mxu0 0.0
    %1243 = vmatpush1.xpose.msra.mxu0 0.0
    %1244 = vmatprep.subr.mxu0 0.0
    %1245 = vmatpush1.xpose.msra.mxu0 0.0
    %1246 = vmatprep.subr.mxu0 0.0
    %1247 = vmatpush1.xpose.msra.mxu0 0.0
    %1248 = vmatprep.subr.mxu0 0.0
    %1249 = vmatpush1.xpose.msra.mxu0 0.0
    %1250 = vmatprep.subr.mxu0 0.0
    %1251 = vmatpush1.xpose.msra.mxu0 0.0
    %1252 = vmatprep.subr.mxu0 0.0
    %1253 = vmatpush1.xpose.msra.mxu0 0.0
    %1254 = vmatprep.subr.mxu0 0.0
    %1255 = vmatpush1.xpose.msra.mxu0 0.0
    %1256 = vmatprep.subr.mxu0 0.0
    %1257 = vmatpush1.xpose.msra.mxu0 0.0
    %1258 = vmatprep.mubr.f32.mxu0 0.0
    %1259 = vmatmul.mubr.f32.gmra.mrb[0].mxu0 %v1190
    %v1260 = vpop.f32.mrb[0].mxu0
    %v1261 = vadd.f32 0.0, %v1260
    %v1262 = vpop.f32.mrb[0].mxu0
    %1263 = vdwg.mxu0
    %v1264 = vsel %vm122, %v1183, -inf
    %1265 = vmax.xlane.f32.xlu0 %v1264
    %v1266 = vpop.xlane.xlu0 %1265
    %v1267 = vsel %vm122, %v1261, -inf
    %1268 = vmax.xlane.f32.xlu0 %v1267
    %v1269 = vpop.xlane.xlu0 %1268
    %v1270 = vsub.f32 %v1183, %v1266
    %v1271 = vsub.f32 %v1261, %v1269
    %v1272 = vmul.f32 %v1270, 1.442695
    %v1273 = vpow.pop %v1272
    %v1274 = vmul.f32 %v1271, 1.442695
    %v1275 = vpow.pop %v1274
    %v1276 = vsel %vm122, %v1273, 0.0
    %1277 = vadd.xlane.f32.xlu0 %v1276
    %v1278 = vpop.xlane.xlu0 %1277
    %v1279 = vsel %vm122, %v1275, 0.0
    %1280 = vadd.xlane.f32.xlu0 %v1279
    %v1281 = vpop.xlane.xlu0 %1280
    %v1282 = vrcp.pop %v1278
    %v1283 = vrcp.pop %v1281
    %v1284 = vmul.f32 %v1273, %v1282
    %v1285 = vmul.f32 %v1275, %v1283
    %1286 = vrot.lane.b32.xlu0 %v111, 40
    %v1287 = vpop.permute.xlu0 %1286
    %v1290 = vsel %vm122, %v1284, 0
    %1292 = vmatprep.subr.mxu0 0.0
    %1293 = vmatpush1.msra.mxu0 %v1287
    %1294 = vmatprep.subr.mxu0 0.0
    %1295 = vmatpush1.msra.mxu0 0.0
    %1296 = vmatprep.subr.mxu0 0.0
    %1297 = vmatpush1.msra.mxu0 0.0
    %1298 = vmatprep.subr.mxu0 0.0
    %1299 = vmatpush1.msra.mxu0 0.0
    %1300 = vmatprep.subr.mxu0 0.0
    %1301 = vmatpush1.msra.mxu0 0.0
    %1302 = vmatprep.subr.mxu0 0.0
    %1303 = vmatpush1.msra.mxu0 0.0
    %1304 = vmatprep.subr.mxu0 0.0
    %1305 = vmatpush1.msra.mxu0 0.0
    %1306 = vmatprep.subr.mxu0 0.0
    %1307 = vmatpush1.msra.mxu0 0.0
    %1308 = vmatprep.subr.mxu0 0.0
    %1309 = vmatpush1.msra.mxu0 0.0
    %1310 = vmatprep.subr.mxu0 0.0
    %1311 = vmatpush1.msra.mxu0 0.0
    %1312 = vmatprep.subr.mxu0 0.0
    %1313 = vmatpush1.msra.mxu0 0.0
    %1314 = vmatprep.subr.mxu0 0.0
    %1315 = vmatpush1.msra.mxu0 0.0
    %1316 = vmatprep.subr.mxu0 0.0
    %1317 = vmatpush1.msra.mxu0 0.0
    %1318 = vmatprep.subr.mxu0 0.0
    %1319 = vmatpush1.msra.mxu0 0.0
    %1320 = vmatprep.subr.mxu0 0.0
    %1321 = vmatpush1.msra.mxu0 0.0
    %1322 = vmatprep.subr.mxu0 0.0
    %1323 = vmatpush1.msra.mxu0 0.0
    %1324 = vmatprep.subr.mxu0 0.0
    %1325 = vmatpush1.msra.mxu0 0.0
    %1326 = vmatprep.subr.mxu0 0.0
    %1327 = vmatpush1.msra.mxu0 0.0
    %1328 = vmatprep.subr.mxu0 0.0
    %1329 = vmatpush1.msra.mxu0 0.0
    %1330 = vmatprep.subr.mxu0 0.0
    %1331 = vmatpush1.msra.mxu0 0.0
    %1332 = vmatprep.subr.mxu0 0.0
    %1333 = vmatpush1.msra.mxu0 0.0
    %1334 = vmatprep.subr.mxu0 0.0
    %1335 = vmatpush1.msra.mxu0 0.0
    %1336 = vmatprep.subr.mxu0 0.0
    %1337 = vmatpush1.msra.mxu0 0.0
    %1338 = vmatprep.subr.mxu0 0.0
    %1339 = vmatpush1.msra.mxu0 0.0
    %1340 = vmatprep.subr.mxu0 0.0
    %1341 = vmatpush1.msra.mxu0 0.0
    %1342 = vmatprep.subr.mxu0 0.0
    %1343 = vmatpush1.msra.mxu0 0.0
    %1344 = vmatprep.subr.mxu0 0.0
    %1345 = vmatpush1.msra.mxu0 0.0
    %1346 = vmatprep.subr.mxu0 0.0
    %1347 = vmatpush1.msra.mxu0 0.0
    %1348 = vmatprep.subr.mxu0 0.0
    %1349 = vmatpush1.msra.mxu0 0.0
    %1350 = vmatprep.subr.mxu0 0.0
    %1351 = vmatpush1.msra.mxu0 0.0
    %1352 = vmatprep.subr.mxu0 0.0
    %1353 = vmatpush1.msra.mxu0 0.0
    %1354 = vmatprep.subr.mxu0 0.0
    %1355 = vmatpush1.msra.mxu0 0.0
    %1356 = vmatprep.mubr.f32.mxu0 0.0
    %1357 = vmatmul.mubr.f32.gmra.mrb[0].mxu0 %v1290
    %v1358 = vpop.f32.mrb[0].mxu0
    %v1359 = vadd.f32 0.0, %v1358
    %v1360 = vpop.f32.mrb[0].mxu0
    %1361 = vdwg.mxu0
    %1362 = vrot.lane.b32.xlu0 %v116, 40
    %v1363 = vpop.permute.xlu0 %1362
    %v1366 = vsel %vm122, %v1285, 0
    %1368 = vmatprep.subr.mxu0 0.0
    %1369 = vmatpush1.msra.mxu0 %v1363
    %1370 = vmatprep.subr.mxu0 0.0
    %1371 = vmatpush1.msra.mxu0 0.0
    %1372 = vmatprep.subr.mxu0 0.0
    %1373 = vmatpush1.msra.mxu0 0.0
    %1374 = vmatprep.subr.mxu0 0.0
    %1375 = vmatpush1.msra.mxu0 0.0
    %1376 = vmatprep.subr.mxu0 0.0
    %1377 = vmatpush1.msra.mxu0 0.0
    %1378 = vmatprep.subr.mxu0 0.0
    %1379 = vmatpush1.msra.mxu0 0.0
    %1380 = vmatprep.subr.mxu0 0.0
    %1381 = vmatpush1.msra.mxu0 0.0
    %1382 = vmatprep.subr.mxu0 0.0
    %1383 = vmatpush1.msra.mxu0 0.0
    %1384 = vmatprep.subr.mxu0 0.0
    %1385 = vmatpush1.msra.mxu0 0.0
    %1386 = vmatprep.subr.mxu0 0.0
    %1387 = vmatpush1.msra.mxu0 0.0
    %1388 = vmatprep.subr.mxu0 0.0
    %1389 = vmatpush1.msra.mxu0 0.0
    %1390 = vmatprep.subr.mxu0 0.0
    %1391 = vmatpush1.msra.mxu0 0.0
    %1392 = vmatprep.subr.mxu0 0.0
    %1393 = vmatpush1.msra.mxu0 0.0
    %1394 = vmatprep.subr.mxu0 0.0
    %1395 = vmatpush1.msra.mxu0 0.0
    %1396 = vmatprep.subr.mxu0 0.0
    %1397 = vmatpush1.msra.mxu0 0.0
    %1398 = vmatprep.subr.mxu0 0.0
    %1399 = vmatpush1.msra.mxu0 0.0
    %1400 = vmatprep.subr.mxu0 0.0
    %1401 = vmatpush1.msra.mxu0 0.0
    %1402 = vmatprep.subr.mxu0 0.0
    %1403 = vmatpush1.msra.mxu0 0.0
    %1404 = vmatprep.subr.mxu0 0.0
    %1405 = vmatpush1.msra.mxu0 0.0
    %1406 = vmatprep.subr.mxu0 0.0
    %1407 = vmatpush1.msra.mxu0 0.0
    %1408 = vmatprep.subr.mxu0 0.0
    %1409 = vmatpush1.msra.mxu0 0.0
    %1410 = vmatprep.subr.mxu0 0.0
    %1411 = vmatpush1.msra.mxu0 0.0
    %1412 = vmatprep.subr.mxu0 0.0
    %1413 = vmatpush1.msra.mxu0 0.0
    %1414 = vmatprep.subr.mxu0 0.0
    %1415 = vmatpush1.msra.mxu0 0.0
    %1416 = vmatprep.subr.mxu0 0.0
    %1417 = vmatpush1.msra.mxu0 0.0
    %1418 = vmatprep.subr.mxu0 0.0
    %1419 = vmatpush1.msra.mxu0 0.0
    %1420 = vmatprep.subr.mxu0 0.0
    %1421 = vmatpush1.msra.mxu0 0.0
    %1422 = vmatprep.subr.mxu0 0.0
    %1423 = vmatpush1.msra.mxu0 0.0
    %1424 = vmatprep.subr.mxu0 0.0
    %1425 = vmatpush1.msra.mxu0 0.0
    %1426 = vmatprep.subr.mxu0 0.0
    %1427 = vmatpush1.msra.mxu0 0.0
    %1428 = vmatprep.subr.mxu0 0.0
    %1429 = vmatpush1.msra.mxu0 0.0
    %1430 = vmatprep.subr.mxu0 0.0
    %1431 = vmatpush1.msra.mxu0 0.0
    %1432 = vmatprep.mubr.f32.mxu0 0.0
    %1433 = vmatmul.mubr.f32.gmra.mrb[0].mxu0 %v1366
    %v1434 = vpop.f32.mrb[0].mxu0
    %v1435 = vadd.f32 0.0, %v1434
    %v1436 = vpop.f32.mrb[0].mxu0
    %1437 = vdwg.mxu0
    %1440 = vrot.lane.b32.xlu0 %v699, 8
    %v1441 = vpop.permute.xlu0 %1440
    %1442 = vrot.lane.b32.xlu0 %v775, 8
    %v1443 = vpop.permute.xlu0 %1442
    %1448 = vrot.lane.b32.xlu0 %v1029, 16
    %v1449 = vpop.permute.xlu0 %1448
    %1450 = vrot.lane.b32.xlu0 %v1105, 16
    %v1451 = vpop.permute.xlu0 %1450
    %1456 = vrot.lane.b32.xlu0 %v1359, 24
    %v1457 = vpop.permute.xlu0 %1456
    %1458 = vrot.lane.b32.xlu0 %v1435, 24
    %v1459 = vpop.permute.xlu0 %1458
    %v1462 = vsel %vm122, %v369, %v1441
    %v1463 = vsel %vm122, %v445, %v1443
    %vm1464 = vcmask 130048
    %v1465 = vsel %vm1464, %v1462, %v1449
    %v1466 = vsel %vm1464, %v1463, %v1451
    %vm1467 = vcmask 195584
    %v1468 = vsel %vm1467, %v1465, %v1457
    %v1469 = vsel %vm1467, %v1466, %v1459
    %v1470 = vld [vmem:[%s2] sm:$0xff]
    %v1471 = vld [vmem:[%s2 + $0x8] sm:$0xff]
    %v1472 = vld [vmem:[%s2 + $0x10] sm:$0xff]
    %v1473 = vld [vmem:[%s2 + $0x18] sm:$0xff]
    %v1474 = vlaneseq
    %v1475 = vshrl.u32 %v1474, 7
    %v1476 = vsub.s32 1, %v1475
    %v1477 = vrot.slane %v20, %v1476
    %vm1478 = vcmask 261120
    %v1480 = vsel %vm1478, %v1468, 0
    %v1483 = vsel %vm1478, %v1469, 0
    %1485 = vmatprep.subr.mxu0 0.0
    %1486 = vmatpush1.msra.mxu0 %v1470
    %1487 = vmatprep.subr.mxu0 0.0
    %1488 = vmatpush1.msra.mxu0 %v1471
    %1489 = vmatprep.subr.mxu0 0.0
    %1490 = vmatpush1.msra.mxu0 %v1472
    %1491 = vmatprep.subr.mxu0 0.0
    %1492 = vmatpush1.msra.mxu0 %v1473
    %1493 = vmatprep.subr.mxu0 0.0
    %1494 = vmatpush1.msra.mxu0 0.0
    %1495 = vmatprep.subr.mxu0 0.0
    %1496 = vmatpush1.msra.mxu0 0.0
    %1497 = vmatprep.subr.mxu0 0.0
    %1498 = vmatpush1.msra.mxu0 0.0
    %1499 = vmatprep.subr.mxu0 0.0
    %1500 = vmatpush1.msra.mxu0 0.0
    %1501 = vmatprep.subr.mxu0 0.0
    %1502 = vmatpush1.msra.mxu0 0.0
    %1503 = vmatprep.subr.mxu0 0.0
    %1504 = vmatpush1.msra.mxu0 0.0
    %1505 = vmatprep.subr.mxu0 0.0
    %1506 = vmatpush1.msra.mxu0 0.0
    %1507 = vmatprep.subr.mxu0 0.0
    %1508 = vmatpush1.msra.mxu0 0.0
    %1509 = vmatprep.subr.mxu0 0.0
    %1510 = vmatpush1.msra.mxu0 0.0
    %1511 = vmatprep.subr.mxu0 0.0
    %1512 = vmatpush1.msra.mxu0 0.0
    %1513 = vmatprep.subr.mxu0 0.0
    %1514 = vmatpush1.msra.mxu0 0.0
    %1515 = vmatprep.subr.mxu0 0.0
    %1516 = vmatpush1.msra.mxu0 0.0
    %1517 = vmatprep.subr.mxu0 0.0
    %1518 = vmatpush1.msra.mxu0 0.0
    %1519 = vmatprep.subr.mxu0 0.0
    %1520 = vmatpush1.msra.mxu0 0.0
    %1521 = vmatprep.subr.mxu0 0.0
    %1522 = vmatpush1.msra.mxu0 0.0
    %1523 = vmatprep.subr.mxu0 0.0
    %1524 = vmatpush1.msra.mxu0 0.0
    %1525 = vmatprep.subr.mxu0 0.0
    %1526 = vmatpush1.msra.mxu0 0.0
    %1527 = vmatprep.subr.mxu0 0.0
    %1528 = vmatpush1.msra.mxu0 0.0
    %1529 = vmatprep.subr.mxu0 0.0
    %1530 = vmatpush1.msra.mxu0 0.0
    %1531 = vmatprep.subr.mxu0 0.0
    %1532 = vmatpush1.msra.mxu0 0.0
    %1533 = vmatprep.subr.mxu0 0.0
    %1534 = vmatpush1.msra.mxu0 0.0
    %1535 = vmatprep.subr.mxu0 0.0
    %1536 = vmatpush1.msra.mxu0 0.0
    %1537 = vmatprep.subr.mxu0 0.0
    %1538 = vmatpush1.msra.mxu0 0.0
    %1539 = vmatprep.subr.mxu0 0.0
    %1540 = vmatpush1.msra.mxu0 0.0
    %1541 = vmatprep.subr.mxu0 0.0
    %1542 = vmatpush1.msra.mxu0 0.0
    %1543 = vmatprep.subr.mxu0 0.0
    %1544 = vmatpush1.msra.mxu0 0.0
    %1545 = vmatprep.subr.mxu0 0.0
    %1546 = vmatpush1.msra.mxu0 0.0
    %1547 = vmatprep.subr.mxu0 0.0
    %1548 = vmatpush1.msra.mxu0 0.0
    %1549 = vmatprep.mubr.f32.mxu0 0.0
    %1550 = vmatmul.mubr.f32.gmra.mrb[0].mxu0 %v1480
    %v1551 = vpop.f32.mrb[0].mxu0
    %v1552 = vadd.f32 %v1477, %v1551
    %v1553 = vpop.f32.mrb[0].mxu0
    %1554 = vmatprep.mubr.f32.mxu0 0.0
    %1555 = vmatmul.mubr.f32.gmra.mrb[0].mxu0 %v1483
    %v1556 = vpop.f32.mrb[0].mxu0
    %v1557 = vadd.f32 %v1477, %v1556
    %v1558 = vpop.f32.mrb[0].mxu0
    %1559 = vdwg.mxu0
    %v1560 = vadd.f32 %v18, %v1552
    %v1561 = vadd.f32 %v19, %v1557
    %v1562 = vsel %vm1478, %v1560, 0.0
    %1563 = vadd.xlane.f32.xlu0 %v1562
    %v1564 = vpop.xlane.xlu0 %1563
    %v1565 = vsel %vm1478, %v1561, 0.0
    %1566 = vadd.xlane.f32.xlu0 %v1565
    %v1567 = vpop.xlane.xlu0 %1566
    %v1568 = vrcp.pop 32.0
    %v1569 = vmul.f32 %v1564, %v1568
    %v1570 = vmul.f32 %v1567, %v1568
    %v1571 = vsub.f32 %v1560, %v1569
    %v1572 = vsub.f32 %v1561, %v1570
    %v1573 = vmul.f32 %v1571, %v1571
    %v1574 = vmul.f32 %v1572, %v1572
    %v1575 = vsel %vm1478, %v1573, 0.0
    %1576 = vadd.xlane.f32.xlu0 %v1575
    %v1577 = vpop.xlane.xlu0 %1576
    %v1578 = vsel %vm1478, %v1574, 0.0
    %1579 = vadd.xlane.f32.xlu0 %v1578
    %v1580 = vpop.xlane.xlu0 %1579
    %v1581 = vmul.f32 %v1577, %v1568
    %v1582 = vmul.f32 %v1580, %v1568
    %v1583 = vadd.f32 %v1581, 1e-05
    %v1584 = vadd.f32 %v1582, 1e-05
    %v1585 = vrsqrt.pop %v1583
    %v1586 = vrsqrt.pop %v1584
    %v1587 = vmul.f32 %v1571, %v1585
    %v1588 = vmul.f32 %v1572, %v1586
    %v1589 = vlaneseq
    %v1590 = vshrl.u32 %v1589, 7
    %v1591 = vsub.s32 4, %v1590
    %v1592 = vrot.slane %v20, %v1591
    %v1593 = vmul.f32 %v1587, %v1592
    %v1594 = vmul.f32 %v1588, %v1592
    %v1595 = vlaneseq
    %v1596 = vshrl.u32 %v1595, 7
    %v1597 = vsub.s32 5, %v1596
    %v1598 = vrot.slane %v20, %v1597
    %v1599 = vadd.f32 %v1593, %v1598
    %v1600 = vadd.f32 %v1594, %v1598
    %v1601 = vld [vmem:[%s2 + $0x20] sm:$0xff]
    %v1602 = vld [vmem:[%s2 + $0x28] sm:$0xff]
    %v1603 = vld [vmem:[%s2 + $0x30] sm:$0xff]
    %v1604 = vld [vmem:[%s2 + $0x38] sm:$0xff]
    %v1605 = vlaneseq
    %v1606 = vshrl.u32 %v1605, 7
    %v1607 = vsub.s32 2, %v1606
    %v1608 = vrot.slane %v20, %v1607
    %v1610 = vsel %vm1478, %v1599, 0
    %v1613 = vsel %vm1478, %v1600, 0
    %1615 = vmatprep.subr.mxu0 0.0
    %1616 = vmatpush1.msra.mxu0 %v1601
    %1617 = vmatprep.subr.mxu0 0.0
    %1618 = vmatpush1.msra.mxu0 %v1602
    %1619 = vmatprep.subr.mxu0 0.0
    %1620 = vmatpush1.msra.mxu0 %v1603
    %1621 = vmatprep.subr.mxu0 0.0
    %1622 = vmatpush1.msra.mxu0 %v1604
    %1623 = vmatprep.subr.mxu0 0.0
    %1624 = vmatpush1.msra.mxu0 0.0
    %1625 = vmatprep.subr.mxu0 0.0
    %1626 = vmatpush1.msra.mxu0 0.0
    %1627 = vmatprep.subr.mxu0 0.0
    %1628 = vmatpush1.msra.mxu0 0.0
    %1629 = vmatprep.subr.mxu0 0.0
    %1630 = vmatpush1.msra.mxu0 0.0
    %1631 = vmatprep.subr.mxu0 0.0
    %1632 = vmatpush1.msra.mxu0 0.0
    %1633 = vmatprep.subr.mxu0 0.0
    %1634 = vmatpush1.msra.mxu0 0.0
    %1635 = vmatprep.subr.mxu0 0.0
    %1636 = vmatpush1.msra.mxu0 0.0
    %1637 = vmatprep.subr.mxu0 0.0
    %1638 = vmatpush1.msra.mxu0 0.0
    %1639 = vmatprep.subr.mxu0 0.0
    %1640 = vmatpush1.msra.mxu0 0.0
    %1641 = vmatprep.subr.mxu0 0.0
    %1642 = vmatpush1.msra.mxu0 0.0
    %1643 = vmatprep.subr.mxu0 0.0
    %1644 = vmatpush1.msra.mxu0 0.0
    %1645 = vmatprep.subr.mxu0 0.0
    %1646 = vmatpush1.msra.mxu0 0.0
    %1647 = vmatprep.subr.mxu0 0.0
    %1648 = vmatpush1.msra.mxu0 0.0
    %1649 = vmatprep.subr.mxu0 0.0
    %1650 = vmatpush1.msra.mxu0 0.0
    %1651 = vmatprep.subr.mxu0 0.0
    %1652 = vmatpush1.msra.mxu0 0.0
    %1653 = vmatprep.subr.mxu0 0.0
    %1654 = vmatpush1.msra.mxu0 0.0
    %1655 = vmatprep.subr.mxu0 0.0
    %1656 = vmatpush1.msra.mxu0 0.0
    %1657 = vmatprep.subr.mxu0 0.0
    %1658 = vmatpush1.msra.mxu0 0.0
    %1659 = vmatprep.subr.mxu0 0.0
    %1660 = vmatpush1.msra.mxu0 0.0
    %1661 = vmatprep.subr.mxu0 0.0
    %1662 = vmatpush1.msra.mxu0 0.0
    %1663 = vmatprep.subr.mxu0 0.0
    %1664 = vmatpush1.msra.mxu0 0.0
    %1665 = vmatprep.subr.mxu0 0.0
    %1666 = vmatpush1.msra.mxu0 0.0
    %1667 = vmatprep.subr.mxu0 0.0
    %1668 = vmatpush1.msra.mxu0 0.0
    %1669 = vmatprep.subr.mxu0 0.0
    %1670 = vmatpush1.msra.mxu0 0.0
    %1671 = vmatprep.subr.mxu0 0.0
    %1672 = vmatpush1.msra.mxu0 0.0
    %1673 = vmatprep.subr.mxu0 0.0
    %1674 = vmatpush1.msra.mxu0 0.0
    %1675 = vmatprep.subr.mxu0 0.0
    %1676 = vmatpush1.msra.mxu0 0.0
    %1677 = vmatprep.subr.mxu0 0.0
    %1678 = vmatpush1.msra.mxu0 0.0
    %1679 = vmatprep.mubr.f32.mxu0 0.0
    %1680 = vmatmul.mubr.f32.gmra.mrb[0].mxu0 %v1610
    %v1681 = vpop.f32.mrb[0].mxu0
    %v1682 = vadd.f32 %v1608, %v1681
    %v1683 = vpop.f32.mrb[0].mxu0
    %1684 = vmatprep.mubr.f32.mxu0 0.0
    %1685 = vmatmul.mubr.f32.gmra.mrb[0].mxu0 %v1613
    %v1686 = vpop.f32.mrb[0].mxu0
    %v1687 = vadd.f32 %v1608, %v1686
    %v1688 = vpop.f32.mrb[0].mxu0
    %1689 = vdwg.mxu0
    %v1690 = vmax.f32 %v1682, 0.0
    %v1691 = vmax.f32 %v1687, 0.0
    %v1692 = vld [vmem:[%s2 + $0x40] sm:$0xff]
    %v1693 = vld [vmem:[%s2 + $0x48] sm:$0xff]
    %v1694 = vld [vmem:[%s2 + $0x50] sm:$0xff]
    %v1695 = vld [vmem:[%s2 + $0x58] sm:$0xff]
    %v1696 = vld [vmem:[%s2 + $0x60] sm:$0xff]
    %v1697 = vld [vmem:[%s2 + $0x68] sm:$0xff]
    %v1698 = vld [vmem:[%s2 + $0x70] sm:$0xff]
    %v1699 = vld [vmem:[%s2 + $0x78] sm:$0xff]
    %v1700 = vlaneseq
    %v1701 = vshrl.u32 %v1700, 7
    %v1702 = vsub.s32 3, %v1701
    %v1703 = vrot.slane %v20, %v1702
    %vm1704 = vcmask 523264
    %v1706 = vsel %vm1704, %v1690, 0
    %v1709 = vsel %vm1704, %v1691, 0
    %1711 = vmatprep.subr.mxu0 0.0
    %1712 = vmatpush1.msra.mxu0 %v1692
    %1713 = vmatprep.subr.mxu0 0.0
    %1714 = vmatpush1.msra.mxu0 %v1693
    %1715 = vmatprep.subr.mxu0 0.0
    %1716 = vmatpush1.msra.mxu0 %v1694
    %1717 = vmatprep.subr.mxu0 0.0
    %1718 = vmatpush1.msra.mxu0 %v1695
    %1719 = vmatprep.subr.mxu0 0.0
    %1720 = vmatpush1.msra.mxu0 %v1696
    %1721 = vmatprep.subr.mxu0 0.0
    %1722 = vmatpush1.msra.mxu0 %v1697
    %1723 = vmatprep.subr.mxu0 0.0
    %1724 = vmatpush1.msra.mxu0 %v1698
    %1725 = vmatprep.subr.mxu0 0.0
    %1726 = vmatpush1.msra.mxu0 %v1699
    %1727 = vmatprep.subr.mxu0 0.0
    %1728 = vmatpush1.msra.mxu0 0.0
    %1729 = vmatprep.subr.mxu0 0.0
    %1730 = vmatpush1.msra.mxu0 0.0
    %1731 = vmatprep.subr.mxu0 0.0
    %1732 = vmatpush1.msra.mxu0 0.0
    %1733 = vmatprep.subr.mxu0 0.0
    %1734 = vmatpush1.msra.mxu0 0.0
    %1735 = vmatprep.subr.mxu0 0.0
    %1736 = vmatpush1.msra.mxu0 0.0
    %1737 = vmatprep.subr.mxu0 0.0
    %1738 = vmatpush1.msra.mxu0 0.0
    %1739 = vmatprep.subr.mxu0 0.0
    %1740 = vmatpush1.msra.mxu0 0.0
    %1741 = vmatprep.subr.mxu0 0.0
    %1742 = vmatpush1.msra.mxu0 0.0
    %1743 = vmatprep.subr.mxu0 0.0
    %1744 = vmatpush1.msra.mxu0 0.0
    %1745 = vmatprep.subr.mxu0 0.0
    %1746 = vmatpush1.msra.mxu0 0.0
    %1747 = vmatprep.subr.mxu0 0.0
    %1748 = vmatpush1.msra.mxu0 0.0
    %1749 = vmatprep.subr.mxu0 0.0
    %1750 = vmatpush1.msra.mxu0 0.0
    %1751 = vmatprep.subr.mxu0 0.0
    %1752 = vmatpush1.msra.mxu0 0.0
    %1753 = vmatprep.subr.mxu0 0.0
    %1754 = vmatpush1.msra.mxu0 0.0
    %1755 = vmatprep.subr.mxu0 0.0
    %1756 = vmatpush1.msra.mxu0 0.0
    %1757 = vmatprep.subr.mxu0 0.0
    %1758 = vmatpush1.msra.mxu0 0.0
    %1759 = vmatprep.subr.mxu0 0.0
    %1760 = vmatpush1.msra.mxu0 0.0
    %1761 = vmatprep.subr.mxu0 0.0
    %1762 = vmatpush1.msra.mxu0 0.0
    %1763 = vmatprep.subr.mxu0 0.0
    %1764 = vmatpush1.msra.mxu0 0.0
    %1765 = vmatprep.subr.mxu0 0.0
    %1766 = vmatpush1.msra.mxu0 0.0
    %1767 = vmatprep.subr.mxu0 0.0
    %1768 = vmatpush1.msra.mxu0 0.0
    %1769 = vmatprep.subr.mxu0 0.0
    %1770 = vmatpush1.msra.mxu0 0.0
    %1771 = vmatprep.subr.mxu0 0.0
    %1772 = vmatpush1.msra.mxu0 0.0
    %1773 = vmatprep.subr.mxu0 0.0
    %1774 = vmatpush1.msra.mxu0 0.0
    %1775 = vmatprep.mubr.f32.mxu0 0.0
    %1776 = vmatmul.mubr.f32.gmra.mrb[0].mxu0 %v1706
    %v1777 = vpop.f32.mrb[0].mxu0
    %v1778 = vadd.f32 %v1703, %v1777
    %v1779 = vpop.f32.mrb[0].mxu0
    %1780 = vmatprep.mubr.f32.mxu0 0.0
    %1781 = vmatmul.mubr.f32.gmra.mrb[0].mxu0 %v1709
    %v1782 = vpop.f32.mrb[0].mxu0
    %v1783 = vadd.f32 %v1703, %v1782
    %v1784 = vpop.f32.mrb[0].mxu0
    %1785 = vdwg.mxu0
    %v1786 = vadd.f32 %v1599, %v1778
    %v1787 = vadd.f32 %v1600, %v1783
    %v1788 = vsel %vm1478, %v1786, 0.0
    %1789 = vadd.xlane.f32.xlu0 %v1788
    %v1790 = vpop.xlane.xlu0 %1789
    %v1791 = vsel %vm1478, %v1787, 0.0
    %1792 = vadd.xlane.f32.xlu0 %v1791
    %v1793 = vpop.xlane.xlu0 %1792
    %v1794 = vmul.f32 %v1790, %v1568
    %v1795 = vmul.f32 %v1793, %v1568
    %v1796 = vsub.f32 %v1786, %v1794
    %v1797 = vsub.f32 %v1787, %v1795
    %v1798 = vmul.f32 %v1796, %v1796
    %v1799 = vmul.f32 %v1797, %v1797
    %v1800 = vsel %vm1478, %v1798, 0.0
    %1801 = vadd.xlane.f32.xlu0 %v1800
    %v1802 = vpop.xlane.xlu0 %1801
    %v1803 = vsel %vm1478, %v1799, 0.0
    %1804 = vadd.xlane.f32.xlu0 %v1803
    %v1805 = vpop.xlane.xlu0 %1804
    %v1806 = vmul.f32 %v1802, %v1568
    %v1807 = vmul.f32 %v1805, %v1568
    %v1808 = vadd.f32 %v1806, 1e-05
    %v1809 = vadd.f32 %v1807, 1e-05
    %v1810 = vrsqrt.pop %v1808
    %v1811 = vrsqrt.pop %v1809
    %v1812 = vmul.f32 %v1796, %v1810
    %v1813 = vmul.f32 %v1797, %v1811
    %v1814 = vlaneseq
    %v1815 = vshrl.u32 %v1814, 7
    %v1816 = vsub.s32 6, %v1815
    %v1817 = vrot.slane %v20, %v1816
    %v1818 = vmul.f32 %v1812, %v1817
    %v1819 = vmul.f32 %v1813, %v1817
    %v1820 = vlaneseq
    %v1821 = vshrl.u32 %v1820, 7
    %v1822 = vsub.s32 7, %v1821
    %v1823 = vrot.slane %v20, %v1822
    %v1824 = vadd.f32 %v1818, %v1823
    %v1825 = vadd.f32 %v1819, %v1823
    %1826 = vst.msk [vmem:[#allocation2] sm:$0xff] %vm1478, %v1824
    %1827 = vst.msk [vmem:[#allocation2 + $0x8] sm:$0xff] %vm1478, %v1825
    // Predicated region
    $region18: #{tpu_custom_call.1} parent=1 // pred_check
      _
    $region19: #{tpu_custom_call.1} parent=1 // pred_check_branch
      %1829 = sbr.rel (0) target = $region21
    $region20: #{tpu_custom_call.1} parent=1 // pred_region
      %s1831 = ssub.s32 256, 256
      %1832 = vsyncadd [#allocation3], %s1831
      %s1833 = sshll.u32 [#allocation2], 4
      %s1834 = int_to_ptr.vmem [resolvable:$true] %s1833
      %1839 = dma.vmem_to_hbm [thread:$0]  %s1834, 256, %s4, [#allocation3], 128, 128, 8
    $region21: #{tpu_custom_call.1} parent=1 // pred_fallthru
      _
    // Predicated region
    $region22: #{tpu_custom_call.1} parent=1 // pred_check
      _
    $region23: #{tpu_custom_call.1} parent=1 // pred_check_branch
      %1841 = sbr.rel (0) target = $region25
    $region24: #{tpu_custom_call.1} parent=1 // pred_region
      %1842 = dma.done [#allocation3], 256
    $region25: #{tpu_custom_call.1} parent=1 // pred_fallthru
      _
    %1843 = vsyncpa [#allocation3], 1

</llo_original>
